<compile_context>
chip_gen: v7x
topology: tpu7x:2x2x1
jax: 0.10.0
libtpu: 0.0.40
codegen_flags: <defaults>
</compile_context>

<pallas_src>
import jax
import jax.numpy as jnp
import numpy as np
from jax import lax
from jax.experimental import pallas as pl
from jax.experimental.pallas import tpu as pltpu


def _self_attention_kernel(x_ref, wq_ref, wkv_ref, wo_ref, bq_ref, bout_ref,
                           o_ref, kv_ref):
    # x_ref:   (C, N)  bf16, full spatial extent, resident across query tiles
    # kv_ref:  (2, Ck, N) bf16 scratch: [0] = K, [1] = V (persists across qi steps)
    # o_ref:   (C, TQ) output tile (lane-dense last dim)
    ck = wq_ref.shape[0]
    tq = o_ref.shape[1]
    qi = pl.program_id(1)

    # Hoisted K/V projection: computed once per batch element (qi == 0 only).
    # bk is dropped (softmax over keys cancels per-query constants exactly);
    # bv is folded into b_out in the wrapper (attention rows sum to 1).
    @pl.when(qi == 0)
    def _():
        kv = jnp.dot(wkv_ref[...], x_ref[...],
                     preferred_element_type=jnp.float32)      # (2Ck, N)
        kv_ref[0] = kv[:ck].astype(jnp.bfloat16)               # K
        kv_ref[1] = kv[ck:].astype(jnp.bfloat16)               # V

    # Query-tile columns sliced from the resident full block (no extra DMA).
    start = pl.multiple_of(qi * tq, tq)
    x_q = x_ref[:, pl.ds(start, tq)]                           # (C, TQ) bf16

    # Q projection: (Ck, C) @ (C, TQ) -> (Ck, TQ), f32 acc, + bq.
    q = jnp.dot(wq_ref[...], x_q, preferred_element_type=jnp.float32) + bq_ref[...]
    q = q.astype(jnp.bfloat16)

    k = kv_ref[0]                                              # (Ck, N) bf16
    v = kv_ref[1]                                              # (Ck, N) bf16

    # energy[i, j] = <q_i, k_j>: contract channel axis of both operands (TN form).
    energy = lax.dot_general(q, k, (((0,), (0,)), ((), ())),
                             preferred_element_type=jnp.float32)   # (TQ, N)

    # Stable softmax over keys, kept in f32 (v5e has no bf16 VPU/EUP).
    m = jnp.max(energy, axis=-1, keepdims=True)
    p = jnp.exp(energy - m)
    denom = jnp.sum(p, axis=-1, keepdims=True)
    attn = (p * pl.reciprocal(denom, approx=True)).astype(jnp.bfloat16)  # (TQ, N)

    # out[c, i] = sum_j v[c, j] * attn[i, j]  (NT form) -> (Ck, TQ).
    out_cn = lax.dot_general(v, attn, (((1,), (1,)), ((), ())),
                             preferred_element_type=jnp.float32)

    # Final 1x1 conv: (C, Ck) @ (Ck, TQ) -> (C, TQ), folded bias, lane-dense store.
    y = jnp.dot(wo_ref[...], out_cn.astype(jnp.bfloat16),
                preferred_element_type=jnp.float32) + bout_ref[...]
    o_ref[...] = y.astype(o_ref.dtype)


def _vmem_estimate_bytes(C, N, TQ, Ck):
    x_block = 2 * C * N * 2                 # bf16 input block, double-buffered
    out_block = 2 * C * TQ * 4              # f32 output block, double-buffered
    kv_scratch = 2 * Ck * N * 2             # bf16 K/V scratch
    softmax = TQ * N * (4 + 4 + 2)          # energy f32 + p f32 + attn bf16
    small = Ck * TQ * (4 + 2 + 4) + C * TQ * 4
    weights = 2 * ((Ck * C + 2 * Ck * C + C * Ck) * 2 + (Ck + C) * 4)
    return x_block + out_block + kv_scratch + softmax + small + weights


def _pick_query_tile(N, C, Ck, budget_bytes=24 << 20):
    # Prefer a single whole-N tile (fewest grid steps: v5e/v6e are single-TC, and
    # on v7x the batch axis feeds both cores).  Only tile the query axis when the
    # f32 softmax intermediates would blow the VMEM budget.
    if _vmem_estimate_bytes(C, N, N, Ck) <= budget_bytes:
        return N
    for t in (512, 256, 128):
        if N % t == 0 and _vmem_estimate_bytes(C, N, t, Ck) <= budget_bytes:
            return t
    for t in (128, 256, 512):
        if N % t == 0:
            return t
    return N
    # TODO(synk): for very large N an online (key-tiled) softmax would bound
    # intermediates further; not needed at these shapes.


def self_attention_pallas(x_nchw, params):
    """x_nchw: (B, C, W, H) float32.  params: dict of torch-layout weights/biases."""
    B, C, W, H = x_nchw.shape
    N = W * H
    Ck = params["wq"].shape[0]          # channels // k
    TQ = _pick_query_tile(N, C, Ck)
    nq = N // TQ

    bf16 = jnp.bfloat16
    f32 = jnp.float32

    # NCHW -> channel-major (B, C, N): free reshape; cast to bf16 once here
    # (halves the input DMA, deletes the per-step in-kernel cast).
    x_cn = x_nchw.reshape(B, C, N).astype(bf16)

    # torch Conv2d 1x1 weight (out, in, 1, 1) used as (out, in): y = W @ x_cn.
    wq_f = params["wq"].reshape(Ck, C).astype(f32)
    wk_f = params["wk"].reshape(Ck, C).astype(f32)
    wv_f = params["wv"].reshape(Ck, C).astype(f32)
    wo_f = params["wo"].reshape(C, Ck).astype(f32)

    wq = wq_f.astype(bf16)
    wkv = jnp.concatenate([wk_f, wv_f], axis=0).astype(bf16)   # (2Ck, C) fused K/V
    wo = wo_f.astype(bf16)
    bq = params["bq"].reshape(Ck, 1).astype(f32)
    # Fold bv through the output conv (exact: attention rows sum to 1):
    # y = wo @ (v·attn^T + bv) + bo = wo@v·attn^T + (wo@bv + bo).
    b_out = (wo_f @ params["bv"].reshape(Ck, 1).astype(f32)
             + params["bo"].reshape(C, 1).astype(f32))
    # params["bk"] intentionally unused: softmax over keys cancels it exactly.

    vmem_limit = int(min(32 << 20, max(16 << 20,
                                       2 * _vmem_estimate_bytes(C, N, TQ, Ck))))

    wfull = lambda b, qi: (0, 0)
    out_cn = pl.pallas_call(
        _self_attention_kernel,
        out_shape=jax.ShapeDtypeStruct((B, C, N), x_nchw.dtype),
        grid_spec=pltpu.PrefetchScalarGridSpec(
            num_scalar_prefetch=0,
            grid=(B, nq),
            in_specs=[
                pl.BlockSpec((pl.Squeezed(), C, N), lambda b, qi: (b, 0, 0)),  # x
                pl.BlockSpec((Ck, C), wfull),        # wq
                pl.BlockSpec((2 * Ck, C), wfull),    # wkv (fused K/V)
                pl.BlockSpec((C, Ck), wfull),        # wo
                pl.BlockSpec((Ck, 1), wfull),        # bq
                pl.BlockSpec((C, 1), wfull),         # b_out = wo@bv + bo
            ],
            out_specs=pl.BlockSpec((pl.Squeezed(), C, TQ), lambda b, qi: (b, 0, qi)),
            scratch_shapes=[pltpu.VMEM((2, Ck, N), bf16)],     # hoisted K/V
        ),
        compiler_params=pltpu.CompilerParams(
            # qi must be sequential (K/V scratch reuse); batch stays parallel so
            # v7x megacore sharding is preserved whenever B >= 2.
            dimension_semantics=("parallel", "arbitrary"),
            vmem_limit_bytes=vmem_limit,
        ),
    )(x_cn, wq, wkv, wo, bq, b_out)

    # (B, C, N) -> NCHW: free reshape.
    return out_cn.reshape(B, C, W, H)


def self_attention_reference(x, params):
    """Pure-JAX f32 reference replicating the PyTorch forward exactly (NCHW)."""
    B, C, W, H = x.shape
    N = W * H
    Ck = params["wq"].shape[0]

    def conv1x1(inp, w, b):
        # w: (out, in, 1, 1)
        return jnp.einsum("bchw,oc->bohw", inp, w.reshape(w.shape[0], w.shape[1])) \
            + b[None, :, None, None]

    query = conv1x1(x, params["wq"], params["bq"]).reshape(B, Ck, N).transpose(0, 2, 1)
    key = conv1x1(x, params["wk"], params["bk"]).reshape(B, Ck, N)
    energy = jnp.einsum("bnc,bcm->bnm", query, key)
    attention = jax.nn.softmax(energy, axis=-1)
    value = conv1x1(x, params["wv"], params["bv"]).reshape(B, Ck, N)
    out = jnp.einsum("bcn,bmn->bcm", value, attention)  # bmm(value, attn^T)
    out = out.reshape(B, Ck, W, H)
    return conv1x1(out, params["wo"], params["bo"])


if __name__ == "__main__":
    B, C, W, H = 2, 32, 16, 16   # N = 256 -> single whole-N query tile, grid=(2, 1)
    k = 8
    Ck = C // k

    key0 = jax.random.PRNGKey(0)
    keys = jax.random.split(key0, 9)
    params = {
        "wq": jax.random.normal(keys[0], (Ck, C, 1, 1), jnp.float32) * 0.1,
        "bq": jax.random.normal(keys[1], (Ck,), jnp.float32) * 0.1,
        "wk": jax.random.normal(keys[2], (Ck, C, 1, 1), jnp.float32) * 0.1,
        "bk": jax.random.normal(keys[3], (Ck,), jnp.float32) * 0.1,
        "wv": jax.random.normal(keys[4], (Ck, C, 1, 1), jnp.float32) * 0.1,
        "bv": jax.random.normal(keys[5], (Ck,), jnp.float32) * 0.1,
        "wo": jax.random.normal(keys[6], (C, Ck, 1, 1), jnp.float32) * 0.1,
        "bo": jax.random.normal(keys[7], (C,), jnp.float32) * 0.1,
    }
    x = jax.random.normal(keys[8], (B, C, W, H), jnp.float32)

    y_kernel = jax.block_until_ready(self_attention_pallas(x, params))
    y_ref = jax.block_until_ready(self_attention_reference(x, params))

    # bf16 MXU operands + wrapper bf16 x cast with f32 accumulation -> ~1% budget.
    np.testing.assert_allclose(np.asarray(y_kernel), np.asarray(y_ref),
                               rtol=2e-2, atol=2e-2)
    print("KERNEL_OK")
</pallas_src>

<mosaic_0001>
module attributes {stable_mosaic.version = 11 : i64} {
  func.func @_self_attention_kernel(%arg0: i32, %arg1: i32, %arg2: memref<1x32x256xbf16, #tpu.memory_space<vmem>>, %arg3: memref<4x32xbf16, #tpu.memory_space<vmem>>, %arg4: memref<8x32xbf16, #tpu.memory_space<vmem>>, %arg5: memref<32x4xbf16, #tpu.memory_space<vmem>>, %arg6: memref<4x1xf32, #tpu.memory_space<vmem>>, %arg7: memref<32x1xf32, #tpu.memory_space<vmem>>, %arg8: memref<1x32x256xf32, #tpu.memory_space<vmem>>, %arg9: memref<2x4x256xbf16, #tpu.memory_space<vmem>>) attributes {dimension_semantics = [#tpu.dimension_semantics<parallel>, #tpu.dimension_semantics<arbitrary>], iteration_bounds = array<i64: 2, 1>, scalar_prefetch = 0 : i64, scratch_operands = 1 : i64, tpu.core_type = #tpu.core_type<tc>, window_params = [{transform_indices = @transform_0, window_bounds = array<i64: 1, 32, 256>}, {pipeline_mode = #tpu.pipeline_mode<synchronous>, transform_indices = @transform_1, window_bounds = array<i64: 4, 32>}, {pipeline_mode = #tpu.pipeline_mode<synchronous>, transform_indices = @transform_2, window_bounds = array<i64: 8, 32>}, {pipeline_mode = #tpu.pipeline_mode<synchronous>, transform_indices = @transform_3, window_bounds = array<i64: 32, 4>}, {pipeline_mode = #tpu.pipeline_mode<synchronous>, transform_indices = @transform_4, window_bounds = array<i64: 4, 1>}, {pipeline_mode = #tpu.pipeline_mode<synchronous>, transform_indices = @transform_5, window_bounds = array<i64: 32, 1>}, {transform_indices = @transform_6, window_bounds = array<i64: 1, 32, 256>}]} {
    %c0_i32 = arith.constant 0 : i32
    %0 = arith.cmpi eq, %arg1, %c0_i32 : i32
    %1 = arith.extui %0 : i1 to i32
    %c0_i32_0 = arith.constant 0 : i32
    %2 = arith.cmpi ne, %1, %c0_i32_0 : i32
    scf.if %2 {
      %c0_23 = arith.constant 0 : index
      %c0_24 = arith.constant 0 : index
      %40 = vector.load %arg4[%c0_23, %c0_24] : memref<8x32xbf16, #tpu.memory_space<vmem>>, vector<8x32xbf16>
      %c0_25 = arith.constant 0 : index
      %c0_26 = arith.constant 0 : index
      %c0_27 = arith.constant 0 : index
      %41 = vector.load %arg2[%c0_25, %c0_26, %c0_27] : memref<1x32x256xbf16, #tpu.memory_space<vmem>>, vector<1x32x256xbf16>
      %42 = vector.shape_cast %41 : vector<1x32x256xbf16> to vector<32x256xbf16>
      %cst_28 = arith.constant dense<0.000000e+00> : vector<8x256xf32>
      %43 = tpu.matmul %40, %42, %cst_28 {dimension_numbers = #tpu.dot_dimension_numbers<[1], [0], [0], [1], [0, 0, 1, 1], [], []>} : vector<8x32xbf16>, vector<32x256xbf16>, vector<8x256xf32> -> vector<8x256xf32>
      %44 = vector.extract_strided_slice %43 {offsets = [0, 0], sizes = [4, 256], strides = [1, 1]} : vector<8x256xf32> to vector<4x256xf32>
      %45 = arith.truncf %44 : vector<4x256xf32> to vector<4x256xbf16>
      %c0_29 = arith.constant 0 : index
      %c0_30 = arith.constant 0 : index
      %c0_31 = arith.constant 0 : index
      %46 = vector.load %arg9[%c0_29, %c0_30, %c0_31] : memref<2x4x256xbf16, #tpu.memory_space<vmem>>, vector<1x4x256xbf16>
      %47 = vector.shape_cast %46 : vector<1x4x256xbf16> to vector<4x256xbf16>
      %48 = vector.shape_cast %45 : vector<4x256xbf16> to vector<1x4x256xbf16>
      tpu.vector_store %arg9[%c0_29, %c0_30, %c0_31], %48 {strides = array<i32>} : memref<2x4x256xbf16, #tpu.memory_space<vmem>>, vector<1x4x256xbf16>,
      %49 = vector.extract_strided_slice %43 {offsets = [4, 0], sizes = [4, 256], strides = [1, 1]} : vector<8x256xf32> to vector<4x256xf32>
      %50 = arith.truncf %49 : vector<4x256xf32> to vector<4x256xbf16>
      %c1_32 = arith.constant 1 : index
      %c0_33 = arith.constant 0 : index
      %c0_34 = arith.constant 0 : index
      %51 = vector.load %arg9[%c1_32, %c0_33, %c0_34] : memref<2x4x256xbf16, #tpu.memory_space<vmem>>, vector<1x4x256xbf16>
      %52 = vector.shape_cast %51 : vector<1x4x256xbf16> to vector<4x256xbf16>
      %53 = vector.shape_cast %50 : vector<4x256xbf16> to vector<1x4x256xbf16>
      tpu.vector_store %arg9[%c1_32, %c0_33, %c0_34], %53 {strides = array<i32>} : memref<2x4x256xbf16, #tpu.memory_space<vmem>>, vector<1x4x256xbf16>,
    } else {
    }
    %c256_i32 = arith.constant 256 : i32
    %3 = arith.muli %arg1, %c256_i32 : i32
    %4 = tpu.assume_multiple %3, 256 : i32
    %c0 = arith.constant 0 : index
    %c0_1 = arith.constant 0 : index
    %5 = arith.index_cast %4 : i32 to index
    %6 = vector.load %arg2[%c0, %c0_1, %5] : memref<1x32x256xbf16, #tpu.memory_space<vmem>>, vector<1x32x256xbf16>
    %7 = vector.shape_cast %6 : vector<1x32x256xbf16> to vector<32x256xbf16>
    %c0_2 = arith.constant 0 : index
    %c0_3 = arith.constant 0 : index
    %8 = vector.load %arg3[%c0_2, %c0_3] : memref<4x32xbf16, #tpu.memory_space<vmem>>, vector<4x32xbf16>
    %cst = arith.constant dense<0.000000e+00> : vector<4x256xf32>
    %9 = tpu.matmul %8, %7, %cst {dimension_numbers = #tpu.dot_dimension_numbers<[1], [0], [0], [1], [0, 0, 1, 1], [], []>} : vector<4x32xbf16>, vector<32x256xbf16>, vector<4x256xf32> -> vector<4x256xf32>
    %c0_4 = arith.constant 0 : index
    %c0_5 = arith.constant 0 : index
    %10 = vector.load %arg6[%c0_4, %c0_5] : memref<4x1xf32, #tpu.memory_space<vmem>>, vector<4x1xf32>
    %11 = vector.broadcast %10 : vector<4x1xf32> to vector<4x256xf32>
    %12 = arith.addf %9, %11 : vector<4x256xf32>
    %13 = arith.truncf %12 : vector<4x256xf32> to vector<4x256xbf16>
    %c0_6 = arith.constant 0 : index
    %c0_7 = arith.constant 0 : index
    %c0_8 = arith.constant 0 : index
    %14 = vector.load %arg9[%c0_6, %c0_7, %c0_8] : memref<2x4x256xbf16, #tpu.memory_space<vmem>>, vector<1x4x256xbf16>
    %15 = vector.shape_cast %14 : vector<1x4x256xbf16> to vector<4x256xbf16>
    %c1 = arith.constant 1 : index
    %c0_9 = arith.constant 0 : index
    %c0_10 = arith.constant 0 : index
    %16 = vector.load %arg9[%c1, %c0_9, %c0_10] : memref<2x4x256xbf16, #tpu.memory_space<vmem>>, vector<1x4x256xbf16>
    %17 = vector.shape_cast %16 : vector<1x4x256xbf16> to vector<4x256xbf16>
    %cst_11 = arith.constant dense<0.000000e+00> : vector<256x256xf32>
    %18 = tpu.matmul %13, %15, %cst_11 {dimension_numbers = #tpu.dot_dimension_numbers<[0], [0], [1], [1], [0, 1, 1, 1], [], []>} : vector<4x256xbf16>, vector<4x256xbf16>, vector<256x256xf32> -> vector<256x256xf32>
    %cst_12 = arith.constant dense<0xFF800000> : vector<256xf32>
    %19 = vector.multi_reduction <maximumf>, %18, %cst_12 [1] : vector<256x256xf32> to vector<256xf32>
    %20 = vector.shape_cast %19 : vector<256xf32> to vector<256x1xf32>
    %21 = vector.broadcast %20 : vector<256x1xf32> to vector<256x256xf32>
    %22 = arith.subf %18, %21 : vector<256x256xf32>
    %23 = math.exp %22 : vector<256x256xf32>
    %cst_13 = arith.constant dense<0.000000e+00> : vector<256xf32>
    %24 = vector.multi_reduction <add>, %23, %cst_13 [1] : vector<256x256xf32> to vector<256xf32>
    %25 = vector.shape_cast %24 : vector<256xf32> to vector<256x1xf32>
    %26 = tpu.reciprocal %25 {approx = true} : vector<256x1xf32> -> vector<256x1xf32>
    %27 = vector.broadcast %26 : vector<256x1xf32> to vector<256x256xf32>
    %28 = arith.mulf %23, %27 : vector<256x256xf32>
    %29 = arith.truncf %28 : vector<256x256xf32> to vector<256x256xbf16>
    %cst_14 = arith.constant dense<0.000000e+00> : vector<4x256xf32>
    %30 = tpu.matmul %17, %29, %cst_14 {dimension_numbers = #tpu.dot_dimension_numbers<[1], [1], [0], [0], [0, 0, 1, 0], [], []>} : vector<4x256xbf16>, vector<256x256xbf16>, vector<4x256xf32> -> vector<4x256xf32>
    %c0_15 = arith.constant 0 : index
    %c0_16 = arith.constant 0 : index
    %31 = vector.load %arg5[%c0_15, %c0_16] : memref<32x4xbf16, #tpu.memory_space<vmem>>, vector<32x4xbf16>
    %32 = arith.truncf %30 : vector<4x256xf32> to vector<4x256xbf16>
    %cst_17 = arith.constant dense<0.000000e+00> : vector<32x256xf32>
    %33 = tpu.matmul %31, %32, %cst_17 {dimension_numbers = #tpu.dot_dimension_numbers<[1], [0], [0], [1], [0, 0, 1, 1], [], []>} : vector<32x4xbf16>, vector<4x256xbf16>, vector<32x256xf32> -> vector<32x256xf32>
    %c0_18 = arith.constant 0 : index
    %c0_19 = arith.constant 0 : index
    %34 = vector.load %arg7[%c0_18, %c0_19] : memref<32x1xf32, #tpu.memory_space<vmem>>, vector<32x1xf32>
    %35 = vector.broadcast %34 : vector<32x1xf32> to vector<32x256xf32>
    %36 = arith.addf %33, %35 : vector<32x256xf32>
    %c0_20 = arith.constant 0 : index
    %c0_21 = arith.constant 0 : index
    %c0_22 = arith.constant 0 : index
    %37 = vector.load %arg8[%c0_20, %c0_21, %c0_22] : memref<1x32x256xf32, #tpu.memory_space<vmem>>, vector<1x32x256xf32>
    %38 = vector.shape_cast %37 : vector<1x32x256xf32> to vector<32x256xf32>
    %39 = vector.shape_cast %36 : vector<32x256xf32> to vector<1x32x256xf32>
    tpu.vector_store %arg8[%c0_20, %c0_21, %c0_22], %39 {strides = array<i32>} : memref<1x32x256xf32, #tpu.memory_space<vmem>>, vector<1x32x256xf32>,
    return
  }
  func.func @transform_0(%arg0: i32, %arg1: i32) -> (i32, i32, i32) {
    %c0_i32 = arith.constant 0 : i32
    %c0_i32_0 = arith.constant 0 : i32
    %c0_i32_1 = arith.constant 0 : i32
    return %arg0, %c0_i32, %c0_i32_0 : i32, i32, i32
  }
  func.func @transform_1(%arg0: i32, %arg1: i32) -> (i32, i32) {
    %c0_i32 = arith.constant 0 : i32
    %c0_i32_0 = arith.constant 0 : i32
    %c0_i32_1 = arith.constant 0 : i32
    return %c0_i32, %c0_i32_0 : i32, i32
  }
  func.func @transform_2(%arg0: i32, %arg1: i32) -> (i32, i32) {
    %c0_i32 = arith.constant 0 : i32
    %c0_i32_0 = arith.constant 0 : i32
    %c0_i32_1 = arith.constant 0 : i32
    return %c0_i32, %c0_i32_0 : i32, i32
  }
  func.func @transform_3(%arg0: i32, %arg1: i32) -> (i32, i32) {
    %c0_i32 = arith.constant 0 : i32
    %c0_i32_0 = arith.constant 0 : i32
    %c0_i32_1 = arith.constant 0 : i32
    return %c0_i32, %c0_i32_0 : i32, i32
  }
  func.func @transform_4(%arg0: i32, %arg1: i32) -> (i32, i32) {
    %c0_i32 = arith.constant 0 : i32
    %c0_i32_0 = arith.constant 0 : i32
    %c0_i32_1 = arith.constant 0 : i32
    return %c0_i32, %c0_i32_0 : i32, i32
  }
  func.func @transform_5(%arg0: i32, %arg1: i32) -> (i32, i32) {
    %c0_i32 = arith.constant 0 : i32
    %c0_i32_0 = arith.constant 0 : i32
    %c0_i32_1 = arith.constant 0 : i32
    return %c0_i32, %c0_i32_0 : i32, i32
  }
  func.func @transform_6(%arg0: i32, %arg1: i32) -> (i32, i32, i32) {
    %c0_i32 = arith.constant 0 : i32
    %c0_i32_0 = arith.constant 0 : i32
    return %arg0, %c0_i32, %arg1 : i32, i32, i32
  }
}

</mosaic_0001>

<llo_original>
// kernel: tpu_custom_call.1
$region0: #{tpu_custom_call.1}
  #allocation0 [shape = 'u32[]', space=smem, size = 0x4, offset = 0x4, fixed_abs, tag = 'smem constant byte address 0x4 - core index']
  #allocation1 [shape = 'u32[144,128]{1,0:T(1,128)}', space=vmem, size = 0x12000, scoped, tag = 'internal scratch']
  #allocation2 [shape = 'bf16[2,4,256]{2,1,0:T(4,128)(2,1)}', space=vmem, size = 0x1000, scoped, tag = 'scratch operand']
  %s0 = inlined_call_operand.hbm [shape: bf16[2,32,256], index: 0, kind: input, shape index: {}]
  %s1 = inlined_call_operand.vmem [shape: bf16[4,32], index: 1, kind: input, shape index: {}]
  %s2 = inlined_call_operand.vmem [shape: bf16[8,32], index: 2, kind: input, shape index: {}]
  %s3 = inlined_call_operand.vmem [shape: bf16[32,4], index: 3, kind: input, shape index: {}]
  %s4 = inlined_call_operand.vmem [shape: f32[4,1], index: 4, kind: input, shape index: {}]
  %s5 = inlined_call_operand.vmem [shape: f32[32,1], index: 5, kind: input, shape index: {}]
  %s6 = inlined_call_operand.hbm [shape: f32[2,32,256], index: 6, kind: output, shape index: {}]
  %s7 = sld [smem:[#allocation0]]
  $region65: #{tpu_custom_call.1} parent=0
    _
  %s9 = ssub.s32 1, %s7
  %s10 = scalar_select 0, %s9, %s7
  $region1: #{tpu_custom_call.1} parent=0
    #allocation3 [shape = 'u8[32768]{0}', space=vmem, size = 0x8000, scoped, tag = 'input window, operand 0']
    #allocation4 [shape = 's32[2]{0}', space=sflag, size = 0x8, scoped, tag = 'scoped memory for tpu_custom_call.1']
    #allocation5 [shape = 's32[2]{0}', space=sflag, size = 0x8, scoped, tag = 'scoped memory for tpu_custom_call.1']
    #allocation6 [shape = 'u8[65536]{0}', space=vmem, size = 0x10000, scoped, tag = 'output window, operand 0']
    %11 = vsyncpa [#allocation4], 0
    %s12 = scalar_lea.sflag [#allocation4], 1
    %13 = vsyncpa %s12, 0
    %14 = vsyncpa [#allocation5], 0
    %s15 = scalar_lea.sflag [#allocation5], 1
    %16 = vsyncpa %s15, 0
    loop: start=0, step=1, limit=4
    $region2: #{tpu_custom_call.1} parent=1 // loop_pre_header
      _
    $region3: #{tpu_custom_call.1} parent=1 // loop_header
      %s18 = sphi 0, %s22
      %p19 = scmp.ge.s32.totalorder %s18, 4
      %s25 = sphi 0, %s37
      %s26 = sphi 0, %s33
      %s27 = sphi 0, %s25
      %s28 = sphi 0, %s26
      %s29 = sphi 0, %s27
      %s30 = sphi 0, %s28
      %s40 = sphi 0, %s42
      %s43 = sphi 0, %s40
      %s44 = sphi 0, %s43
      %s60 = sphi 0, %s44
      %s64 = sphi 0, %s64
      %s66 = sphi 0, %s64
      %s67 = sphi 0, %s66
      %s81 = sphi 0, %s67
      %s85 = sphi 0, %s85
      %s87 = sphi 0, %s85
      %s88 = sphi 0, %s87
      %s102 = sphi 0, %s88
      %s106 = sphi 0, %s106
      %s108 = sphi 0, %s106
      %s109 = sphi 0, %s108
      %s123 = sphi 0, %s109
      %s127 = sphi 0, %s127
      %s129 = sphi 0, %s127
      %s130 = sphi 0, %s129
      %s144 = sphi 0, %s130
      %s148 = sphi 0, %s148
      %s150 = sphi 0, %s148
      %s151 = sphi 0, %s150
      %s165 = sphi 0, %s151
      %s173 = sphi 0, %s175
      %s176 = sphi 0, %s173
      %s177 = sphi 0, %s176
      %s193 = sphi 0, %s177
    $region4: #{tpu_custom_call.1} parent=1 // loop_header_branch
      %21 = sbr.rel (%p19) target = $region8
    $region5: #{tpu_custom_call.1} parent=1 // loop_body
      %s23 = ssub.s32 %s18, 1
      %s24 = ssub.s32 %s18, 2
      %s31 = sadd.s32 1, %s26
      %p32 = scmp.ge.s32.totalorder %s31, 1
      %s33 = scalar_select %p32, 0, %s31
      %s34 = sadd.s32 1, %s25
      %s35 = scalar_select %p32, %s34, %s25
      %p36 = scmp.ge.s32.totalorder %s35, 2
      %s37 = scalar_select %p36, 0, %s35
      %s38 = ssub.s32 %s25, %s37
      %p39 = scmp.eq.s32.totalorder %s38, 0
      %s41 = sadd.s32 %s40, 1
      %s42 = scalar_select %p39, %s40, %s41
      %p45 = pneg %p39
      %p46 = scmp.eq.s32.totalorder %s18, 1
      %p47 = por %p45, %p46
      %p48 = scmp.ne.s32.totalorder %s40, %s43
      %p49 = scmp.eq.s32.totalorder %s18, 0
      %p50 = por %p48, %p49
      %p51 = scmp.ne.s32.totalorder %s40, %s43
      %p52 = scmp.eq.s32.totalorder %s23, 1
      %p53 = por %p51, %p52
      %p54 = scmp.ne.s32.totalorder %s43, %s44
      %p55 = scmp.eq.s32.totalorder %s23, 0
      %p56 = por %p54, %p55
      %p57 = scmp.ne.s32.totalorder %s43, %s44
      %p58 = scmp.eq.s32.totalorder %s24, 1
      %p59 = por %p57, %p58
      %p61 = scmp.ne.s32.totalorder %s44, %s60
      %p62 = scmp.eq.s32.totalorder %s24, 0
      %p63 = por %p61, %p62
      %s65 = sadd.s32 %s64, 1
      %p68 = scmp.eq.s32.totalorder %s18, 1
      %p69 = scmp.ne.s32.totalorder %s64, %s66
      %p70 = scmp.eq.s32.totalorder %s18, 0
      %p71 = por %p69, %p70
      %p72 = scmp.ne.s32.totalorder %s64, %s66
      %p73 = scmp.eq.s32.totalorder %s23, 1
      %p74 = por %p72, %p73
      %p75 = scmp.ne.s32.totalorder %s66, %s67
      %p76 = scmp.eq.s32.totalorder %s23, 0
      %p77 = por %p75, %p76
      %p78 = scmp.ne.s32.totalorder %s66, %s67
      %p79 = scmp.eq.s32.totalorder %s24, 1
      %p80 = por %p78, %p79
      %p82 = scmp.ne.s32.totalorder %s67, %s81
      %p83 = scmp.eq.s32.totalorder %s24, 0
      %p84 = por %p82, %p83
      %s86 = sadd.s32 %s85, 1
      %p89 = scmp.eq.s32.totalorder %s18, 1
      %p90 = scmp.ne.s32.totalorder %s85, %s87
      %p91 = scmp.eq.s32.totalorder %s18, 0
      %p92 = por %p90, %p91
      %p93 = scmp.ne.s32.totalorder %s85, %s87
      %p94 = scmp.eq.s32.totalorder %s23, 1
      %p95 = por %p93, %p94
      %p96 = scmp.ne.s32.totalorder %s87, %s88
      %p97 = scmp.eq.s32.totalorder %s23, 0
      %p98 = por %p96, %p97
      %p99 = scmp.ne.s32.totalorder %s87, %s88
      %p100 = scmp.eq.s32.totalorder %s24, 1
      %p101 = por %p99, %p100
      %p103 = scmp.ne.s32.totalorder %s88, %s102
      %p104 = scmp.eq.s32.totalorder %s24, 0
      %p105 = por %p103, %p104
      %s107 = sadd.s32 %s106, 1
      %p110 = scmp.eq.s32.totalorder %s18, 1
      %p111 = scmp.ne.s32.totalorder %s106, %s108
      %p112 = scmp.eq.s32.totalorder %s18, 0
      %p113 = por %p111, %p112
      %p114 = scmp.ne.s32.totalorder %s106, %s108
      %p115 = scmp.eq.s32.totalorder %s23, 1
      %p116 = por %p114, %p115
      %p117 = scmp.ne.s32.totalorder %s108, %s109
      %p118 = scmp.eq.s32.totalorder %s23, 0
      %p119 = por %p117, %p118
      %p120 = scmp.ne.s32.totalorder %s108, %s109
      %p121 = scmp.eq.s32.totalorder %s24, 1
      %p122 = por %p120, %p121
      %p124 = scmp.ne.s32.totalorder %s109, %s123
      %p125 = scmp.eq.s32.totalorder %s24, 0
      %p126 = por %p124, %p125
      %s128 = sadd.s32 %s127, 1
      %p131 = scmp.eq.s32.totalorder %s18, 1
      %p132 = scmp.ne.s32.totalorder %s127, %s129
      %p133 = scmp.eq.s32.totalorder %s18, 0
      %p134 = por %p132, %p133
      %p135 = scmp.ne.s32.totalorder %s127, %s129
      %p136 = scmp.eq.s32.totalorder %s23, 1
      %p137 = por %p135, %p136
      %p138 = scmp.ne.s32.totalorder %s129, %s130
      %p139 = scmp.eq.s32.totalorder %s23, 0
      %p140 = por %p138, %p139
      %p141 = scmp.ne.s32.totalorder %s129, %s130
      %p142 = scmp.eq.s32.totalorder %s24, 1
      %p143 = por %p141, %p142
      %p145 = scmp.ne.s32.totalorder %s130, %s144
      %p146 = scmp.eq.s32.totalorder %s24, 0
      %p147 = por %p145, %p146
      %s149 = sadd.s32 %s148, 1
      %p152 = scmp.eq.s32.totalorder %s18, 1
      %p153 = scmp.ne.s32.totalorder %s148, %s150
      %p154 = scmp.eq.s32.totalorder %s18, 0
      %p155 = por %p153, %p154
      %p156 = scmp.ne.s32.totalorder %s148, %s150
      %p157 = scmp.eq.s32.totalorder %s23, 1
      %p158 = por %p156, %p157
      %p159 = scmp.ne.s32.totalorder %s150, %s151
      %p160 = scmp.eq.s32.totalorder %s23, 0
      %p161 = por %p159, %p160
      %p162 = scmp.ne.s32.totalorder %s150, %s151
      %p163 = scmp.eq.s32.totalorder %s24, 1
      %p164 = por %p162, %p163
      %p166 = scmp.ne.s32.totalorder %s151, %s165
      %p167 = scmp.eq.s32.totalorder %s24, 0
      %p168 = por %p166, %p167
      %s169 = ssub.s32 %s25, %s37
      %s170 = ssub.s32 %s26, %s33
      %s171 = sor.u32 %s169, %s170
      %p172 = scmp.eq.s32.totalorder %s171, 0
      %s174 = sadd.s32 %s173, 1
      %s175 = scalar_select %p172, %s173, %s174
      %p178 = pneg %p172
      %p179 = scmp.eq.s32.totalorder %s18, 1
      %p180 = por %p178, %p179
      %p181 = scmp.ne.s32.totalorder %s173, %s176
      %p182 = scmp.eq.s32.totalorder %s18, 0
      %p183 = por %p181, %p182
      %p184 = scmp.ne.s32.totalorder %s173, %s176
      %p185 = scmp.eq.s32.totalorder %s23, 1
      %p186 = por %p184, %p185
      %p187 = scmp.ne.s32.totalorder %s176, %s177
      %p188 = scmp.eq.s32.totalorder %s23, 0
      %p189 = por %p187, %p188
      %p190 = scmp.ne.s32.totalorder %s176, %s177
      %p191 = scmp.eq.s32.totalorder %s24, 1
      %p192 = por %p190, %p191
      %p194 = scmp.ne.s32.totalorder %s177, %s193
      %p195 = scmp.eq.s32.totalorder %s24, 0
      %p196 = por %p194, %p195
      %p197 = scmp.le.s32.totalorder 1, %s18
      %p198 = scmp.lt.s32.totalorder %s18, 3
      %p199 = pnand %p197, %p198
      %p200 = pneg %p199
      // Predicated region
      $region9: #{tpu_custom_call.1} parent=5 // pred_check
        _
      $region10: #{tpu_custom_call.1} parent=5 // pred_check_branch
        %202 = sbr.rel (%p199) target = $region12
      $region11: #{tpu_custom_call.1} parent=5 // pred_region
        %s203 = ssub.s32 %s18, 1
        // Predicated region
        $region13: #{tpu_custom_call.1} parent=11 // pred_check
          %p204 = pneg %p77
        $region14: #{tpu_custom_call.1} parent=11 // pred_check_branch
          %206 = sbr.rel (%p204) target = $region16
        $region15: #{tpu_custom_call.1} parent=11 // pred_region
          _
        $region16: #{tpu_custom_call.1} parent=11 // pred_fallthru
          _
        // Predicated region
        $region17: #{tpu_custom_call.1} parent=11 // pred_check
          %p207 = pneg %p98
        $region18: #{tpu_custom_call.1} parent=11 // pred_check_branch
          %209 = sbr.rel (%p207) target = $region20
        $region19: #{tpu_custom_call.1} parent=11 // pred_region
          _
        $region20: #{tpu_custom_call.1} parent=11 // pred_fallthru
          _
        // Predicated region
        $region21: #{tpu_custom_call.1} parent=11 // pred_check
          %p210 = pneg %p119
        $region22: #{tpu_custom_call.1} parent=11 // pred_check_branch
          %212 = sbr.rel (%p210) target = $region24
        $region23: #{tpu_custom_call.1} parent=11 // pred_region
          _
        $region24: #{tpu_custom_call.1} parent=11 // pred_fallthru
          _
        // Predicated region
        $region25: #{tpu_custom_call.1} parent=11 // pred_check
          %p213 = pneg %p140
        $region26: #{tpu_custom_call.1} parent=11 // pred_check_branch
          %215 = sbr.rel (%p213) target = $region28
        $region27: #{tpu_custom_call.1} parent=11 // pred_region
          _
        $region28: #{tpu_custom_call.1} parent=11 // pred_fallthru
          _
        // Predicated region
        $region29: #{tpu_custom_call.1} parent=11 // pred_check
          %p216 = pneg %p161
        $region30: #{tpu_custom_call.1} parent=11 // pred_check_branch
          %218 = sbr.rel (%p216) target = $region32
        $region31: #{tpu_custom_call.1} parent=11 // pred_region
          _
        $region32: #{tpu_custom_call.1} parent=11 // pred_fallthru
          _
      $region12: #{tpu_custom_call.1} parent=5 // pred_fallthru
        _
      %p219 = scmp.lt.s32.totalorder %s18, 2
      // Predicated region
      $region33: #{tpu_custom_call.1} parent=5 // pred_check
        %p220 = pneg %p219
      $region34: #{tpu_custom_call.1} parent=5 // pred_check_branch
        %222 = sbr.rel (%p220) target = $region36
      $region35: #{tpu_custom_call.1} parent=5 // pred_region
        // Predicated region
        $region37: #{tpu_custom_call.1} parent=35 // pred_check
          %p223 = pneg %p50
        $region38: #{tpu_custom_call.1} parent=35 // pred_check_branch
          %225 = sbr.rel (%p223) target = $region40
        $region39: #{tpu_custom_call.1} parent=35 // pred_region
          %s226 = sand.u32 %s40, 1
          %s227 = scalar_lea.sflag [#allocation4], %s226
          %s228 = sand.u32 %s40, 1
          %s229 = smul.addr %s228, 32
          %s230 = scalar_lea.vmem [#allocation3], %s229
          %s232 = ssub.s32 512, 512
          %233 = vsyncadd %s227, %s232
          %s234 = smul.addr %s25, 8
          %s235 = smul.addr %s234, 64
          %s236 = scalar_lea.hbm %s0, %s235
          %s237 = sshll.u32 %s230, 4
          %s238 = int_to_ptr.vmem [resolvable:$true] %s237
          %243 = dma.hbm_to_vmem [thread:$0]  %s236, 512, %s238, %s227, 128, 128, 8
        $region40: #{tpu_custom_call.1} parent=35 // pred_fallthru
          _
      $region36: #{tpu_custom_call.1} parent=5 // pred_fallthru
        _
      %p244 = scmp.le.s32.totalorder 1, %s18
      %p245 = scmp.lt.s32.totalorder %s18, 3
      %p246 = pnand %p244, %p245
      %p247 = pneg %p246
      // Predicated region
      $region41: #{tpu_custom_call.1} parent=5 // pred_check
        _
      $region42: #{tpu_custom_call.1} parent=5 // pred_check_branch
        %249 = sbr.rel (%p246) target = $region44
      $region43: #{tpu_custom_call.1} parent=5 // pred_region
        %s250 = ssub.s32 %s18, 1
        %s251 = sand.u32 %s43, 1
        %s252 = scalar_lea.sflag [#allocation4], %s251
        %s253 = sand.u32 %s43, 1
        %s254 = smul.addr %s253, 32
        %s255 = scalar_lea.vmem [#allocation3], %s254
        // Predicated region
        $region45: #{tpu_custom_call.1} parent=43 // pred_check
          %p256 = pneg %p56
        $region46: #{tpu_custom_call.1} parent=43 // pred_check_branch
          %258 = sbr.rel (%p256) target = $region48
        $region47: #{tpu_custom_call.1} parent=43 // pred_region
          %259 = dma.done %s252, 512
        $region48: #{tpu_custom_call.1} parent=43 // pred_fallthru
          _
        %s260 = sand.u32 %s43, 1
        %s261 = scalar_lea.sflag [#allocation4], %s260
        %s262 = sand.u32 %s43, 1
        %s263 = smul.addr %s262, 32
        %s264 = scalar_lea.vmem [#allocation3], %s263
        %p265 = pneg %p56
        %p266 = pneg %p53
        %p267 = pneg %p77
        %p268 = pneg %p74
        %p269 = pneg %p98
        %p270 = pneg %p95
        %p271 = pneg %p119
        %p272 = pneg %p116
        %p273 = pneg %p140
        %p274 = pneg %p137
        %p275 = pneg %p161
        %p276 = pneg %p158
        %p277 = pneg %p189
        %p278 = pneg %p186
        %s279 = sand.u32 %s176, 1
        %s280 = scalar_lea.sflag [#allocation5], %s279
        %s281 = sand.u32 %s176, 1
        %s282 = smul.addr %s281, 64
        %s283 = scalar_lea.vmem [#allocation6], %s282
        %s284 = smul.u32 2, %s28
        %p286 = scmp.eq.s32.totalorder %s28, 0
        // Predicated region
        $region49: #{tpu_custom_call.1} parent=43 // pred_check
          %p287 = pneg %p286
        $region50: #{tpu_custom_call.1} parent=43 // pred_check_branch
          %289 = sbr.rel (%p287) target = $region52
        $region51: #{tpu_custom_call.1} parent=43 // pred_region
          %v290 = vld [vmem:[%s2] sm:$0xf]
          %v291 = vld [vmem:[%s255] sm:$0xff]
          %v292 = vld [vmem:[%s255 + $0x8] sm:$0xff]
          %v293 = vld [vmem:[%s255 + $0x10] sm:$0xff]
          %v294 = vld [vmem:[%s255 + $0x18] sm:$0xff]
          %v299 = vunpack.c.l.b16 %v291
          %v300 = vunpack.c.h.b16 %v291
          %v301 = vunpack.c.l.b16 %v292
          %v302 = vunpack.c.h.b16 %v292
          %v303 = vunpack.c.l.b16 %v293
          %v304 = vunpack.c.h.b16 %v293
          %v305 = vunpack.c.l.b16 %v294
          %v306 = vunpack.c.h.b16 %v294
          %v307 = vpack.c.b16 %v301, %v299
          %v308 = vpack.c.b16 %v302, %v300
          %v309 = vpack.c.b16 %v305, %v303
          %v310 = vpack.c.b16 %v306, %v304
          %vm315 = vcmask 261120
          %v317 = vsel %vm315, %v290, 0
          %319 = vmatprep.subr.bf16.mxu0 %v308
          %320 = vmatpush1.bf16.msra.mxu0 %v307
          %321 = vmatprep.subr.bf16.mxu0 %v310
          %322 = vmatpush1.bf16.msra.mxu0 %v309
          %323 = vmatprep.subr.bf16.mxu0 0
          %324 = vmatpush1.bf16.msra.mxu0 0
          %325 = vmatprep.subr.bf16.mxu0 0
          %326 = vmatpush1.bf16.msra.mxu0 0
          %327 = vmatprep.subr.bf16.mxu0 0
          %328 = vmatpush1.bf16.msra.mxu0 0
          %329 = vmatprep.subr.bf16.mxu0 0
          %330 = vmatpush1.bf16.msra.mxu0 0
          %331 = vmatprep.subr.bf16.mxu0 0
          %332 = vmatpush1.bf16.msra.mxu0 0
          %333 = vmatprep.subr.bf16.mxu0 0
          %334 = vmatpush1.bf16.msra.mxu0 0
          %335 = vmatprep.subr.bf16.mxu0 0
          %336 = vmatpush1.bf16.msra.mxu0 0
          %337 = vmatprep.subr.bf16.mxu0 0
          %338 = vmatpush1.bf16.msra.mxu0 0
          %339 = vmatprep.subr.bf16.mxu0 0
          %340 = vmatpush1.bf16.msra.mxu0 0
          %341 = vmatprep.subr.bf16.mxu0 0
          %342 = vmatpush1.bf16.msra.mxu0 0
          %343 = vmatprep.subr.bf16.mxu0 0
          %344 = vmatpush1.bf16.msra.mxu0 0
          %345 = vmatprep.subr.bf16.mxu0 0
          %346 = vmatpush1.bf16.msra.mxu0 0
          %347 = vmatprep.subr.bf16.mxu0 0
          %348 = vmatpush1.bf16.msra.mxu0 0
          %349 = vmatprep.subr.bf16.mxu0 0
          %350 = vmatpush1.bf16.msra.mxu0 0
          %351 = vmatprep.mubr.bf16.mxu0 0
          %352 = vmatmul.mubr.bf16.gmra.mrb[0].mxu0 %v317
          %v353 = vpop.f32.mrb[0].mxu0
          %v354 = vadd.f32 0.0, %v353
          %v355 = vpop.f32.mrb[0].mxu0
          %v356 = vadd.f32 0.0, %v355
          %v357 = vpop.f32.mrb[0].mxu0
          %v358 = vpop.f32.mrb[0].mxu0
          %359 = vdwg.mxu0
          %v360 = vpack.c.bf16 %v354, %v354
          %v361 = vpack.c.bf16 %v356, %v356
          %v364 = vcombine.low %v360, %v361
          %v366 = vunpack.c.l.s4 1983009808
          %v367 = vunpack.c.0.s8 %v366
          %v368 = vlaneseq
          %v369 = vshrl.u32 %v368, 7
          %v370 = vsub.s32 %v367, %v369
          %v371 = vrot.slane %v364, %v370
          %373 = vst [vmem:[#allocation2] sm:$0xf] %v371
          %v374 = vcombine.high %v371, %v371
          %s376 = scalar_lea.vmem [#allocation2], 4
          %377 = vst [vmem:[%s376] sm:$0xf] %v374
        $region52: #{tpu_custom_call.1} parent=43 // pred_fallthru
          _
        %s378 = smul.u32 %s28, 256
        %s379 = sshra.s32 %s378, 7
        %s380 = sand.u32 %s378, 127
        %s381 = smul.addr %s379, 4
        %s382 = scalar_lea.vmem %s255, %s381 [#allocation3]
        %v383 = vld [vmem:[%s382] sm:$0xff]
        %v384 = vld [vmem:[%s382 + $0x8] sm:$0xff]
        %v385 = vld [vmem:[%s382 + $0x10] sm:$0xff]
        %v386 = vld [vmem:[%s382 + $0x18] sm:$0xff]
        %v387 = vld [vmem:[%s1] sm:$0x3]
        %v388 = vld [vmem:[%s4] sm:$0xf]
        %390 = vset.pattern.permute.xlu0 0
        %391 = vperm.xlu0 %390, %v388
        %v392 = vpop.permute.xlu0 %391
        %v398 = vunpack.c.l.b16 %v383
        %v399 = vunpack.c.h.b16 %v383
        %v400 = vunpack.c.l.b16 %v384
        %v401 = vunpack.c.h.b16 %v384
        %v402 = vunpack.c.l.b16 %v385
        %v403 = vunpack.c.h.b16 %v385
        %v404 = vunpack.c.l.b16 %v386
        %v405 = vunpack.c.h.b16 %v386
        %v406 = vpack.c.b16 %v400, %v398
        %v407 = vpack.c.b16 %v401, %v399
        %v408 = vpack.c.b16 %v404, %v402
        %v409 = vpack.c.b16 %v405, %v403
        %vm414 = vcmask 261120
        %v416 = vsel %vm414, %v387, 0
        %418 = vmatprep.subr.bf16.mxu0 %v407
        %419 = vmatpush1.bf16.msra.mxu0 %v406
        %420 = vmatprep.subr.bf16.mxu0 %v409
        %421 = vmatpush1.bf16.msra.mxu0 %v408
        %422 = vmatprep.subr.bf16.mxu0 0
        %423 = vmatpush1.bf16.msra.mxu0 0
        %424 = vmatprep.subr.bf16.mxu0 0
        %425 = vmatpush1.bf16.msra.mxu0 0
        %426 = vmatprep.subr.bf16.mxu0 0
        %427 = vmatpush1.bf16.msra.mxu0 0
        %428 = vmatprep.subr.bf16.mxu0 0
        %429 = vmatpush1.bf16.msra.mxu0 0
        %430 = vmatprep.subr.bf16.mxu0 0
        %431 = vmatpush1.bf16.msra.mxu0 0
        %432 = vmatprep.subr.bf16.mxu0 0
        %433 = vmatpush1.bf16.msra.mxu0 0
        %434 = vmatprep.subr.bf16.mxu0 0
        %435 = vmatpush1.bf16.msra.mxu0 0
        %436 = vmatprep.subr.bf16.mxu0 0
        %437 = vmatpush1.bf16.msra.mxu0 0
        %438 = vmatprep.subr.bf16.mxu0 0
        %439 = vmatpush1.bf16.msra.mxu0 0
        %440 = vmatprep.subr.bf16.mxu0 0
        %441 = vmatpush1.bf16.msra.mxu0 0
        %442 = vmatprep.subr.bf16.mxu0 0
        %443 = vmatpush1.bf16.msra.mxu0 0
        %444 = vmatprep.subr.bf16.mxu0 0
        %445 = vmatpush1.bf16.msra.mxu0 0
        %446 = vmatprep.subr.bf16.mxu0 0
        %447 = vmatpush1.bf16.msra.mxu0 0
        %448 = vmatprep.subr.bf16.mxu0 0
        %449 = vmatpush1.bf16.msra.mxu0 0
        %450 = vmatprep.mubr.bf16.mxu0 0
        %451 = vmatmul.mubr.bf16.gmra.mrb[0].mxu0 %v416
        %v452 = vpop.f32.mrb[0].mxu0
        %v453 = vadd.f32 %v392, %v452
        %v454 = vpop.f32.mrb[0].mxu0
        %v455 = vadd.f32 %v392, %v454
        %v456 = vpop.f32.mrb[0].mxu0
        %v457 = vpop.f32.mrb[0].mxu0
        %458 = vdwg.mxu0
        %v459 = vpack.c.bf16 %v453, %v453
        %v460 = vpack.c.bf16 %v455, %v455
        %v461 = vld [vmem:[#allocation2] sm:$0xf]
        %s462 = scalar_lea.vmem [#allocation2], 4
        %v463 = vld [vmem:[%s462] sm:$0xf]
        %464 = vxpose.xlu0.c.b16.start [1/8] %v459, 128
        %465 = vxpose.xlu0.c.b16.cont [2/8] 0, 128
        %466 = vxpose.xlu0.c.b16.cont [3/8] 0, 128
        %467 = vxpose.xlu0.c.b16.cont [4/8] 0, 128
        %468 = vxpose.xlu0.c.b16.cont [5/8] 0, 128
        %469 = vxpose.xlu0.c.b16.cont [6/8] 0, 128
        %470 = vxpose.xlu0.c.b16.cont [7/8] 0, 128
        %471 = vxpose.xlu0.c.b16.end [8/8] 0, 128
        %v472 = vpop.trf.xlu0
        %v473 = vpop.trf.xlu0
        %v474 = vpop.trf.xlu0
        %v475 = vpop.trf.xlu0
        %v476 = vpop.trf.xlu0
        %v477 = vpop.trf.xlu0
        %v478 = vpop.trf.xlu0
        %v479 = vpop.trf.xlu0
        %480 = vxpose.xlu0.c.b16.start [1/8] %v460, 128
        %481 = vxpose.xlu0.c.b16.cont [2/8] 0, 128
        %482 = vxpose.xlu0.c.b16.cont [3/8] 0, 128
        %483 = vxpose.xlu0.c.b16.cont [4/8] 0, 128
        %484 = vxpose.xlu0.c.b16.cont [5/8] 0, 128
        %485 = vxpose.xlu0.c.b16.cont [6/8] 0, 128
        %486 = vxpose.xlu0.c.b16.cont [7/8] 0, 128
        %487 = vxpose.xlu0.c.b16.end [8/8] 0, 128
        %v488 = vpop.trf.xlu0
        %v489 = vpop.trf.xlu0
        %v490 = vpop.trf.xlu0
        %v491 = vpop.trf.xlu0
        %v492 = vpop.trf.xlu0
        %v493 = vpop.trf.xlu0
        %v494 = vpop.trf.xlu0
        %v495 = vpop.trf.xlu0
        %v498 = vunpack.c.l.s4 1983009808
        %v499 = vunpack.c.0.s8 %v498
        %v500 = vlaneseq
        %v501 = vshrl.u32 %v500, 7
        %v502 = vsub.s32 %v499, %v501
        %v503 = vrot.slane %v461, %v502
        %v504 = vcombine.high %v503, %v503
        %vm505 = vcmask 31744
        %v507 = vsel %vm505, %v472, 0
        %v510 = vsel %vm505, %v473, 0
        %v513 = vsel %vm505, %v474, 0
        %v516 = vsel %vm505, %v475, 0
        %v519 = vsel %vm505, %v476, 0
        %v522 = vsel %vm505, %v477, 0
        %v525 = vsel %vm505, %v478, 0
        %v528 = vsel %vm505, %v479, 0
        %v531 = vsel %vm505, %v488, 0
        %v534 = vsel %vm505, %v489, 0
        %v537 = vsel %vm505, %v490, 0
        %v540 = vsel %vm505, %v491, 0
        %v543 = vsel %vm505, %v492, 0
        %v546 = vsel %vm505, %v493, 0
        %v549 = vsel %vm505, %v494, 0
        %v552 = vsel %vm505, %v495, 0
        %vm554 = vcmask 1041408
        %v556 = vsel %vm554, %v503, 0
        %v559 = vsel %vm554, %v504, 0
        %561 = vmatprep.subr.bf16.mxu0 %v559
        %562 = vmatpush1.bf16.msra.mxu0 %v556
        %563 = vmatprep.subr.bf16.mxu0 0
        %564 = vmatpush1.bf16.msra.mxu0 0
        %565 = vmatprep.subr.bf16.mxu0 0
        %566 = vmatpush1.bf16.msra.mxu0 0
        %567 = vmatprep.subr.bf16.mxu0 0
        %568 = vmatpush1.bf16.msra.mxu0 0
        %569 = vmatprep.subr.bf16.mxu0 0
        %570 = vmatpush1.bf16.msra.mxu0 0
        %571 = vmatprep.subr.bf16.mxu0 0
        %572 = vmatpush1.bf16.msra.mxu0 0
        %573 = vmatprep.subr.bf16.mxu0 0
        %574 = vmatpush1.bf16.msra.mxu0 0
        %575 = vmatprep.subr.bf16.mxu0 0
        %576 = vmatpush1.bf16.msra.mxu0 0
        %577 = vmatprep.subr.bf16.mxu0 0
        %578 = vmatpush1.bf16.msra.mxu0 0
        %579 = vmatprep.subr.bf16.mxu0 0
        %580 = vmatpush1.bf16.msra.mxu0 0
        %581 = vmatprep.subr.bf16.mxu0 0
        %582 = vmatpush1.bf16.msra.mxu0 0
        %583 = vmatprep.subr.bf16.mxu0 0
        %584 = vmatpush1.bf16.msra.mxu0 0
        %585 = vmatprep.subr.bf16.mxu0 0
        %586 = vmatpush1.bf16.msra.mxu0 0
        %587 = vmatprep.subr.bf16.mxu0 0
        %588 = vmatpush1.bf16.msra.mxu0 0
        %589 = vmatprep.subr.bf16.mxu0 0
        %590 = vmatpush1.bf16.msra.mxu0 0
        %591 = vmatprep.subr.bf16.mxu0 0
        %592 = vmatpush1.bf16.msra.mxu0 0
        %593 = vmatprep.mubr.bf16.mxu0 0
        %594 = vmatmul.mubr.bf16.gmra.mrb[0].mxu0 %v507
        %v595 = vpop.f32.mrb[0].mxu0
        %v596 = vadd.f32 0.0, %v595
        %v597 = vpop.f32.mrb[0].mxu0
        %v598 = vadd.f32 0.0, %v597
        %v599 = vpop.f32.mrb[0].mxu0
        %v600 = vadd.f32 0.0, %v599
        %v601 = vpop.f32.mrb[0].mxu0
        %v602 = vadd.f32 0.0, %v601
        %603 = vmatprep.mubr.bf16.mxu0 0
        %604 = vmatmul.mubr.bf16.gmra.mrb[0].mxu0 %v510
        %v605 = vpop.f32.mrb[0].mxu0
        %v606 = vadd.f32 0.0, %v605
        %v607 = vpop.f32.mrb[0].mxu0
        %v608 = vadd.f32 0.0, %v607
        %v609 = vpop.f32.mrb[0].mxu0
        %v610 = vadd.f32 0.0, %v609
        %v611 = vpop.f32.mrb[0].mxu0
        %v612 = vadd.f32 0.0, %v611
        %613 = vmatprep.mubr.bf16.mxu0 0
        %614 = vmatmul.mubr.bf16.gmra.mrb[0].mxu0 %v513
        %v615 = vpop.f32.mrb[0].mxu0
        %v616 = vadd.f32 0.0, %v615
        %v617 = vpop.f32.mrb[0].mxu0
        %v618 = vadd.f32 0.0, %v617
        %v619 = vpop.f32.mrb[0].mxu0
        %v620 = vadd.f32 0.0, %v619
        %v621 = vpop.f32.mrb[0].mxu0
        %v622 = vadd.f32 0.0, %v621
        %623 = vmatprep.mubr.bf16.mxu0 0
        %624 = vmatmul.mubr.bf16.gmra.mrb[0].mxu0 %v516
        %v625 = vpop.f32.mrb[0].mxu0
        %v626 = vadd.f32 0.0, %v625
        %v627 = vpop.f32.mrb[0].mxu0
        %v628 = vadd.f32 0.0, %v627
        %v629 = vpop.f32.mrb[0].mxu0
        %v630 = vadd.f32 0.0, %v629
        %v631 = vpop.f32.mrb[0].mxu0
        %v632 = vadd.f32 0.0, %v631
        %633 = vmatprep.mubr.bf16.mxu0 0
        %634 = vmatmul.mubr.bf16.gmra.mrb[0].mxu0 %v519
        %v635 = vpop.f32.mrb[0].mxu0
        %v636 = vadd.f32 0.0, %v635
        %v637 = vpop.f32.mrb[0].mxu0
        %v638 = vadd.f32 0.0, %v637
        %v639 = vpop.f32.mrb[0].mxu0
        %v640 = vadd.f32 0.0, %v639
        %v641 = vpop.f32.mrb[0].mxu0
        %v642 = vadd.f32 0.0, %v641
        %643 = vmatprep.mubr.bf16.mxu0 0
        %644 = vmatmul.mubr.bf16.gmra.mrb[0].mxu0 %v522
        %v645 = vpop.f32.mrb[0].mxu0
        %v646 = vadd.f32 0.0, %v645
        %v647 = vpop.f32.mrb[0].mxu0
        %v648 = vadd.f32 0.0, %v647
        %v649 = vpop.f32.mrb[0].mxu0
        %v650 = vadd.f32 0.0, %v649
        %v651 = vpop.f32.mrb[0].mxu0
        %v652 = vadd.f32 0.0, %v651
        %653 = vmatprep.mubr.bf16.mxu0 0
        %654 = vmatmul.mubr.bf16.gmra.mrb[0].mxu0 %v525
        %v655 = vpop.f32.mrb[0].mxu0
        %v656 = vadd.f32 0.0, %v655
        %v657 = vpop.f32.mrb[0].mxu0
        %v658 = vadd.f32 0.0, %v657
        %v659 = vpop.f32.mrb[0].mxu0
        %v660 = vadd.f32 0.0, %v659
        %v661 = vpop.f32.mrb[0].mxu0
        %v662 = vadd.f32 0.0, %v661
        %663 = vmatprep.mubr.bf16.mxu0 0
        %664 = vmatmul.mubr.bf16.gmra.mrb[0].mxu0 %v528
        %v665 = vpop.f32.mrb[0].mxu0
        %v666 = vadd.f32 0.0, %v665
        %v667 = vpop.f32.mrb[0].mxu0
        %v668 = vadd.f32 0.0, %v667
        %v669 = vpop.f32.mrb[0].mxu0
        %v670 = vadd.f32 0.0, %v669
        %v671 = vpop.f32.mrb[0].mxu0
        %v672 = vadd.f32 0.0, %v671
        %673 = vmatprep.mubr.bf16.mxu0 0
        %674 = vmatmul.mubr.bf16.gmra.mrb[0].mxu0 %v531
        %v675 = vpop.f32.mrb[0].mxu0
        %v676 = vadd.f32 0.0, %v675
        %v677 = vpop.f32.mrb[0].mxu0
        %v678 = vadd.f32 0.0, %v677
        %v679 = vpop.f32.mrb[0].mxu0
        %v680 = vadd.f32 0.0, %v679
        %v681 = vpop.f32.mrb[0].mxu0
        %v682 = vadd.f32 0.0, %v681
        %683 = vmatprep.mubr.bf16.mxu0 0
        %684 = vmatmul.mubr.bf16.gmra.mrb[0].mxu0 %v534
        %v685 = vpop.f32.mrb[0].mxu0
        %v686 = vadd.f32 0.0, %v685
        %v687 = vpop.f32.mrb[0].mxu0
        %v688 = vadd.f32 0.0, %v687
        %v689 = vpop.f32.mrb[0].mxu0
        %v690 = vadd.f32 0.0, %v689
        %v691 = vpop.f32.mrb[0].mxu0
        %v692 = vadd.f32 0.0, %v691
        %693 = vmatprep.mubr.bf16.mxu0 0
        %694 = vmatmul.mubr.bf16.gmra.mrb[0].mxu0 %v537
        %v695 = vpop.f32.mrb[0].mxu0
        %v696 = vadd.f32 0.0, %v695
        %v697 = vpop.f32.mrb[0].mxu0
        %v698 = vadd.f32 0.0, %v697
        %v699 = vpop.f32.mrb[0].mxu0
        %v700 = vadd.f32 0.0, %v699
        %v701 = vpop.f32.mrb[0].mxu0
        %v702 = vadd.f32 0.0, %v701
        %703 = vmatprep.mubr.bf16.mxu0 0
        %704 = vmatmul.mubr.bf16.gmra.mrb[0].mxu0 %v540
        %v705 = vpop.f32.mrb[0].mxu0
        %v706 = vadd.f32 0.0, %v705
        %v707 = vpop.f32.mrb[0].mxu0
        %v708 = vadd.f32 0.0, %v707
        %v709 = vpop.f32.mrb[0].mxu0
        %v710 = vadd.f32 0.0, %v709
        %v711 = vpop.f32.mrb[0].mxu0
        %v712 = vadd.f32 0.0, %v711
        %713 = vmatprep.mubr.bf16.mxu0 0
        %714 = vmatmul.mubr.bf16.gmra.mrb[0].mxu0 %v543
        %v715 = vpop.f32.mrb[0].mxu0
        %v716 = vadd.f32 0.0, %v715
        %v717 = vpop.f32.mrb[0].mxu0
        %v718 = vadd.f32 0.0, %v717
        %v719 = vpop.f32.mrb[0].mxu0
        %v720 = vadd.f32 0.0, %v719
        %v721 = vpop.f32.mrb[0].mxu0
        %v722 = vadd.f32 0.0, %v721
        %723 = vmatprep.mubr.bf16.mxu0 0
        %724 = vmatmul.mubr.bf16.gmra.mrb[0].mxu0 %v546
        %v725 = vpop.f32.mrb[0].mxu0
        %v726 = vadd.f32 0.0, %v725
        %v727 = vpop.f32.mrb[0].mxu0
        %v728 = vadd.f32 0.0, %v727
        %v729 = vpop.f32.mrb[0].mxu0
        %v730 = vadd.f32 0.0, %v729
        %v731 = vpop.f32.mrb[0].mxu0
        %v732 = vadd.f32 0.0, %v731
        %733 = vmatprep.mubr.bf16.mxu0 0
        %734 = vmatmul.mubr.bf16.gmra.mrb[0].mxu0 %v549
        %v735 = vpop.f32.mrb[0].mxu0
        %v736 = vadd.f32 0.0, %v735
        %v737 = vpop.f32.mrb[0].mxu0
        %v738 = vadd.f32 0.0, %v737
        %v739 = vpop.f32.mrb[0].mxu0
        %v740 = vadd.f32 0.0, %v739
        %v741 = vpop.f32.mrb[0].mxu0
        %v742 = vadd.f32 0.0, %v741
        %743 = vmatprep.mubr.bf16.mxu0 0
        %744 = vmatmul.mubr.bf16.gmra.mrb[0].mxu0 %v552
        %v745 = vpop.f32.mrb[0].mxu0
        %v746 = vadd.f32 0.0, %v745
        %v747 = vpop.f32.mrb[0].mxu0
        %v748 = vadd.f32 0.0, %v747
        %v749 = vpop.f32.mrb[0].mxu0
        %v750 = vadd.f32 0.0, %v749
        %v751 = vpop.f32.mrb[0].mxu0
        %v752 = vadd.f32 0.0, %v751
        %753 = vdwg.mxu0
        %v754 = vmax.f32 %v596, %v598
        %755 = vmax.xlane.f32.xlu0 %v754
        %v756 = vpop.xlane.xlu0 %755
        %v757 = vmax.f32 %v600, %v602
        %758 = vmax.xlane.f32.xlu0 %v757
        %v759 = vpop.xlane.xlu0 %758
        %v760 = vmax.f32 %v606, %v608
        %761 = vmax.xlane.f32.xlu0 %v760
        %v762 = vpop.xlane.xlu0 %761
        %v763 = vmax.f32 %v610, %v612
        %764 = vmax.xlane.f32.xlu0 %v763
        %v765 = vpop.xlane.xlu0 %764
        %v766 = vmax.f32 %v616, %v618
        %767 = vmax.xlane.f32.xlu0 %v766
        %v768 = vpop.xlane.xlu0 %767
        %v769 = vmax.f32 %v620, %v622
        %770 = vmax.xlane.f32.xlu0 %v769
        %v771 = vpop.xlane.xlu0 %770
        %v772 = vmax.f32 %v626, %v628
        %773 = vmax.xlane.f32.xlu0 %v772
        %v774 = vpop.xlane.xlu0 %773
        %v775 = vmax.f32 %v630, %v632
        %776 = vmax.xlane.f32.xlu0 %v775
        %v777 = vpop.xlane.xlu0 %776
        %v778 = vmax.f32 %v636, %v638
        %779 = vmax.xlane.f32.xlu0 %v778
        %v780 = vpop.xlane.xlu0 %779
        %v781 = vmax.f32 %v640, %v642
        %782 = vmax.xlane.f32.xlu0 %v781
        %v783 = vpop.xlane.xlu0 %782
        %v784 = vmax.f32 %v646, %v648
        %785 = vmax.xlane.f32.xlu0 %v784
        %v786 = vpop.xlane.xlu0 %785
        %v787 = vmax.f32 %v650, %v652
        %788 = vmax.xlane.f32.xlu0 %v787
        %v789 = vpop.xlane.xlu0 %788
        %v790 = vmax.f32 %v656, %v658
        %791 = vmax.xlane.f32.xlu0 %v790
        %v792 = vpop.xlane.xlu0 %791
        %v793 = vmax.f32 %v660, %v662
        %794 = vmax.xlane.f32.xlu0 %v793
        %v795 = vpop.xlane.xlu0 %794
        %v796 = vmax.f32 %v666, %v668
        %797 = vmax.xlane.f32.xlu0 %v796
        %v798 = vpop.xlane.xlu0 %797
        %v799 = vmax.f32 %v670, %v672
        %800 = vmax.xlane.f32.xlu0 %v799
        %v801 = vpop.xlane.xlu0 %800
        %v802 = vmax.f32 %v676, %v678
        %803 = vmax.xlane.f32.xlu0 %v802
        %v804 = vpop.xlane.xlu0 %803
        %v805 = vmax.f32 %v680, %v682
        %806 = vmax.xlane.f32.xlu0 %v805
        %v807 = vpop.xlane.xlu0 %806
        %v808 = vmax.f32 %v686, %v688
        %809 = vmax.xlane.f32.xlu0 %v808
        %v810 = vpop.xlane.xlu0 %809
        %v811 = vmax.f32 %v690, %v692
        %812 = vmax.xlane.f32.xlu0 %v811
        %v813 = vpop.xlane.xlu0 %812
        %v814 = vmax.f32 %v696, %v698
        %815 = vmax.xlane.f32.xlu0 %v814
        %v816 = vpop.xlane.xlu0 %815
        %v817 = vmax.f32 %v700, %v702
        %818 = vmax.xlane.f32.xlu0 %v817
        %v819 = vpop.xlane.xlu0 %818
        %v820 = vmax.f32 %v706, %v708
        %821 = vmax.xlane.f32.xlu0 %v820
        %v822 = vpop.xlane.xlu0 %821
        %v823 = vmax.f32 %v710, %v712
        %824 = vmax.xlane.f32.xlu0 %v823
        %v825 = vpop.xlane.xlu0 %824
        %v826 = vmax.f32 %v716, %v718
        %827 = vmax.xlane.f32.xlu0 %v826
        %v828 = vpop.xlane.xlu0 %827
        %v829 = vmax.f32 %v720, %v722
        %830 = vmax.xlane.f32.xlu0 %v829
        %v831 = vpop.xlane.xlu0 %830
        %v832 = vmax.f32 %v726, %v728
        %833 = vmax.xlane.f32.xlu0 %v832
        %v834 = vpop.xlane.xlu0 %833
        %v835 = vmax.f32 %v730, %v732
        %836 = vmax.xlane.f32.xlu0 %v835
        %v837 = vpop.xlane.xlu0 %836
        %v838 = vmax.f32 %v736, %v738
        %839 = vmax.xlane.f32.xlu0 %v838
        %v840 = vpop.xlane.xlu0 %839
        %v841 = vmax.f32 %v740, %v742
        %842 = vmax.xlane.f32.xlu0 %v841
        %v843 = vpop.xlane.xlu0 %842
        %v844 = vmax.f32 %v746, %v748
        %845 = vmax.xlane.f32.xlu0 %v844
        %v846 = vpop.xlane.xlu0 %845
        %v847 = vmax.f32 %v750, %v752
        %848 = vmax.xlane.f32.xlu0 %v847
        %v849 = vpop.xlane.xlu0 %848
        %v850 = vsub.f32 %v596, %v756
        %v851 = vsub.f32 %v598, %v756
        %v852 = vsub.f32 %v600, %v759
        %v853 = vsub.f32 %v602, %v759
        %v854 = vsub.f32 %v606, %v762
        %v855 = vsub.f32 %v608, %v762
        %v856 = vsub.f32 %v610, %v765
        %v857 = vsub.f32 %v612, %v765
        %v858 = vsub.f32 %v616, %v768
        %v859 = vsub.f32 %v618, %v768
        %v860 = vsub.f32 %v620, %v771
        %v861 = vsub.f32 %v622, %v771
        %v862 = vsub.f32 %v626, %v774
        %v863 = vsub.f32 %v628, %v774
        %v864 = vsub.f32 %v630, %v777
        %v865 = vsub.f32 %v632, %v777
        %v866 = vsub.f32 %v636, %v780
        %v867 = vsub.f32 %v638, %v780
        %v868 = vsub.f32 %v640, %v783
        %v869 = vsub.f32 %v642, %v783
        %v870 = vsub.f32 %v646, %v786
        %v871 = vsub.f32 %v648, %v786
        %v872 = vsub.f32 %v650, %v789
        %v873 = vsub.f32 %v652, %v789
        %v874 = vsub.f32 %v656, %v792
        %v875 = vsub.f32 %v658, %v792
        %v876 = vsub.f32 %v660, %v795
        %v877 = vsub.f32 %v662, %v795
        %v878 = vsub.f32 %v666, %v798
        %v879 = vsub.f32 %v668, %v798
        %v880 = vsub.f32 %v670, %v801
        %v881 = vsub.f32 %v672, %v801
        %v882 = vsub.f32 %v676, %v804
        %v883 = vsub.f32 %v678, %v804
        %v884 = vsub.f32 %v680, %v807
        %v885 = vsub.f32 %v682, %v807
        %v886 = vsub.f32 %v686, %v810
        %v887 = vsub.f32 %v688, %v810
        %v888 = vsub.f32 %v690, %v813
        %v889 = vsub.f32 %v692, %v813
        %v890 = vsub.f32 %v696, %v816
        %v891 = vsub.f32 %v698, %v816
        %v892 = vsub.f32 %v700, %v819
        %v893 = vsub.f32 %v702, %v819
        %v894 = vsub.f32 %v706, %v822
        %v895 = vsub.f32 %v708, %v822
        %v896 = vsub.f32 %v710, %v825
        %v897 = vsub.f32 %v712, %v825
        %v898 = vsub.f32 %v716, %v828
        %v899 = vsub.f32 %v718, %v828
        %v900 = vsub.f32 %v720, %v831
        %v901 = vsub.f32 %v722, %v831
        %v902 = vsub.f32 %v726, %v834
        %v903 = vsub.f32 %v728, %v834
        %v904 = vsub.f32 %v730, %v837
        %v905 = vsub.f32 %v732, %v837
        %v906 = vsub.f32 %v736, %v840
        %v907 = vsub.f32 %v738, %v840
        %v908 = vsub.f32 %v740, %v843
        %v909 = vsub.f32 %v742, %v843
        %v910 = vsub.f32 %v746, %v846
        %v911 = vsub.f32 %v748, %v846
        %v912 = vsub.f32 %v750, %v849
        %v913 = vsub.f32 %v752, %v849
        %v914 = vmul.f32 %v850, 1.442695
        %v915 = vpow.pop %v914
        %v916 = vmul.f32 %v851, 1.442695
        %v917 = vpow.pop %v916
        %v918 = vmul.f32 %v852, 1.442695
        %v919 = vpow.pop %v918
        %v920 = vmul.f32 %v853, 1.442695
        %v921 = vpow.pop %v920
        %v922 = vmul.f32 %v854, 1.442695
        %v923 = vpow.pop %v922
        %v924 = vmul.f32 %v855, 1.442695
        %v925 = vpow.pop %v924
        %v926 = vmul.f32 %v856, 1.442695
        %v927 = vpow.pop %v926
        %v928 = vmul.f32 %v857, 1.442695
        %v929 = vpow.pop %v928
        %v930 = vmul.f32 %v858, 1.442695
        %v931 = vpow.pop %v930
        %v932 = vmul.f32 %v859, 1.442695
        %v933 = vpow.pop %v932
        %v934 = vmul.f32 %v860, 1.442695
        %v935 = vpow.pop %v934
        %v936 = vmul.f32 %v861, 1.442695
        %v937 = vpow.pop %v936
        %v938 = vmul.f32 %v862, 1.442695
        %v939 = vpow.pop %v938
        %v940 = vmul.f32 %v863, 1.442695
        %v941 = vpow.pop %v940
        %v942 = vmul.f32 %v864, 1.442695
        %v943 = vpow.pop %v942
        %v944 = vmul.f32 %v865, 1.442695
        %v945 = vpow.pop %v944
        %v946 = vmul.f32 %v866, 1.442695
        %v947 = vpow.pop %v946
        %v948 = vmul.f32 %v867, 1.442695
        %v949 = vpow.pop %v948
        %v950 = vmul.f32 %v868, 1.442695
        %v951 = vpow.pop %v950
        %v952 = vmul.f32 %v869, 1.442695
        %v953 = vpow.pop %v952
        %v954 = vmul.f32 %v870, 1.442695
        %v955 = vpow.pop %v954
        %v956 = vmul.f32 %v871, 1.442695
        %v957 = vpow.pop %v956
        %v958 = vmul.f32 %v872, 1.442695
        %v959 = vpow.pop %v958
        %v960 = vmul.f32 %v873, 1.442695
        %v961 = vpow.pop %v960
        %v962 = vmul.f32 %v874, 1.442695
        %v963 = vpow.pop %v962
        %v964 = vmul.f32 %v875, 1.442695
        %v965 = vpow.pop %v964
        %v966 = vmul.f32 %v876, 1.442695
        %v967 = vpow.pop %v966
        %v968 = vmul.f32 %v877, 1.442695
        %v969 = vpow.pop %v968
        %v970 = vmul.f32 %v878, 1.442695
        %v971 = vpow.pop %v970
        %v972 = vmul.f32 %v879, 1.442695
        %v973 = vpow.pop %v972
        %v974 = vmul.f32 %v880, 1.442695
        %v975 = vpow.pop %v974
        %v976 = vmul.f32 %v881, 1.442695
        %v977 = vpow.pop %v976
        %v978 = vmul.f32 %v882, 1.442695
        %v979 = vpow.pop %v978
        %v980 = vmul.f32 %v883, 1.442695
        %v981 = vpow.pop %v980
        %v982 = vmul.f32 %v884, 1.442695
        %v983 = vpow.pop %v982
        %v984 = vmul.f32 %v885, 1.442695
        %v985 = vpow.pop %v984
        %v986 = vmul.f32 %v886, 1.442695
        %v987 = vpow.pop %v986
        %v988 = vmul.f32 %v887, 1.442695
        %v989 = vpow.pop %v988
        %v990 = vmul.f32 %v888, 1.442695
        %v991 = vpow.pop %v990
        %v992 = vmul.f32 %v889, 1.442695
        %v993 = vpow.pop %v992
        %v994 = vmul.f32 %v890, 1.442695
        %v995 = vpow.pop %v994
        %v996 = vmul.f32 %v891, 1.442695
        %v997 = vpow.pop %v996
        %v998 = vmul.f32 %v892, 1.442695
        %v999 = vpow.pop %v998
        %v1000 = vmul.f32 %v893, 1.442695
        %v1001 = vpow.pop %v1000
        %v1002 = vmul.f32 %v894, 1.442695
        %v1003 = vpow.pop %v1002
        %v1004 = vmul.f32 %v895, 1.442695
        %v1005 = vpow.pop %v1004
        %v1006 = vmul.f32 %v896, 1.442695
        %v1007 = vpow.pop %v1006
        %v1008 = vmul.f32 %v897, 1.442695
        %v1009 = vpow.pop %v1008
        %v1010 = vmul.f32 %v898, 1.442695
        %v1011 = vpow.pop %v1010
        %v1012 = vmul.f32 %v899, 1.442695
        %v1013 = vpow.pop %v1012
        %v1014 = vmul.f32 %v900, 1.442695
        %v1015 = vpow.pop %v1014
        %v1016 = vmul.f32 %v901, 1.442695
        %v1017 = vpow.pop %v1016
        %v1018 = vmul.f32 %v902, 1.442695
        %v1019 = vpow.pop %v1018
        %v1020 = vmul.f32 %v903, 1.442695
        %v1021 = vpow.pop %v1020
        %v1022 = vmul.f32 %v904, 1.442695
        %v1023 = vpow.pop %v1022
        %v1024 = vmul.f32 %v905, 1.442695
        %v1025 = vpow.pop %v1024
        %v1026 = vmul.f32 %v906, 1.442695
        %v1027 = vpow.pop %v1026
        %v1028 = vmul.f32 %v907, 1.442695
        %v1029 = vpow.pop %v1028
        %v1030 = vmul.f32 %v908, 1.442695
        %v1031 = vpow.pop %v1030
        %v1032 = vmul.f32 %v909, 1.442695
        %v1033 = vpow.pop %v1032
        %v1034 = vmul.f32 %v910, 1.442695
        %v1035 = vpow.pop %v1034
        %v1036 = vmul.f32 %v911, 1.442695
        %v1037 = vpow.pop %v1036
        %v1038 = vmul.f32 %v912, 1.442695
        %v1039 = vpow.pop %v1038
        %v1040 = vmul.f32 %v913, 1.442695
        %v1041 = vpow.pop %v1040
        %v1042 = vadd.f32 %v915, %v917
        %1043 = vadd.xlane.f32.xlu0 %v1042
        %v1044 = vpop.xlane.xlu0 %1043
        %v1045 = vadd.f32 %v919, %v921
        %1046 = vadd.xlane.f32.xlu0 %v1045
        %v1047 = vpop.xlane.xlu0 %1046
        %v1048 = vadd.f32 %v923, %v925
        %1049 = vadd.xlane.f32.xlu0 %v1048
        %v1050 = vpop.xlane.xlu0 %1049
        %v1051 = vadd.f32 %v927, %v929
        %1052 = vadd.xlane.f32.xlu0 %v1051
        %v1053 = vpop.xlane.xlu0 %1052
        %v1054 = vadd.f32 %v931, %v933
        %1055 = vadd.xlane.f32.xlu0 %v1054
        %v1056 = vpop.xlane.xlu0 %1055
        %v1057 = vadd.f32 %v935, %v937
        %1058 = vadd.xlane.f32.xlu0 %v1057
        %v1059 = vpop.xlane.xlu0 %1058
        %v1060 = vadd.f32 %v939, %v941
        %1061 = vadd.xlane.f32.xlu0 %v1060
        %v1062 = vpop.xlane.xlu0 %1061
        %v1063 = vadd.f32 %v943, %v945
        %1064 = vadd.xlane.f32.xlu0 %v1063
        %v1065 = vpop.xlane.xlu0 %1064
        %v1066 = vadd.f32 %v947, %v949
        %1067 = vadd.xlane.f32.xlu0 %v1066
        %v1068 = vpop.xlane.xlu0 %1067
        %v1069 = vadd.f32 %v951, %v953
        %1070 = vadd.xlane.f32.xlu0 %v1069
        %v1071 = vpop.xlane.xlu0 %1070
        %v1072 = vadd.f32 %v955, %v957
        %1073 = vadd.xlane.f32.xlu0 %v1072
        %v1074 = vpop.xlane.xlu0 %1073
        %v1075 = vadd.f32 %v959, %v961
        %1076 = vadd.xlane.f32.xlu0 %v1075
        %v1077 = vpop.xlane.xlu0 %1076
        %v1078 = vadd.f32 %v963, %v965
        %1079 = vadd.xlane.f32.xlu0 %v1078
        %v1080 = vpop.xlane.xlu0 %1079
        %v1081 = vadd.f32 %v967, %v969
        %1082 = vadd.xlane.f32.xlu0 %v1081
        %v1083 = vpop.xlane.xlu0 %1082
        %v1084 = vadd.f32 %v971, %v973
        %1085 = vadd.xlane.f32.xlu0 %v1084
        %v1086 = vpop.xlane.xlu0 %1085
        %v1087 = vadd.f32 %v975, %v977
        %1088 = vadd.xlane.f32.xlu0 %v1087
        %v1089 = vpop.xlane.xlu0 %1088
        %v1090 = vadd.f32 %v979, %v981
        %1091 = vadd.xlane.f32.xlu0 %v1090
        %v1092 = vpop.xlane.xlu0 %1091
        %v1093 = vadd.f32 %v983, %v985
        %1094 = vadd.xlane.f32.xlu0 %v1093
        %v1095 = vpop.xlane.xlu0 %1094
        %v1096 = vadd.f32 %v987, %v989
        %1097 = vadd.xlane.f32.xlu0 %v1096
        %v1098 = vpop.xlane.xlu0 %1097
        %v1099 = vadd.f32 %v991, %v993
        %1100 = vadd.xlane.f32.xlu0 %v1099
        %v1101 = vpop.xlane.xlu0 %1100
        %v1102 = vadd.f32 %v995, %v997
        %1103 = vadd.xlane.f32.xlu0 %v1102
        %v1104 = vpop.xlane.xlu0 %1103
        %v1105 = vadd.f32 %v999, %v1001
        %1106 = vadd.xlane.f32.xlu0 %v1105
        %v1107 = vpop.xlane.xlu0 %1106
        %v1108 = vadd.f32 %v1003, %v1005
        %1109 = vadd.xlane.f32.xlu0 %v1108
        %v1110 = vpop.xlane.xlu0 %1109
        %v1111 = vadd.f32 %v1007, %v1009
        %1112 = vadd.xlane.f32.xlu0 %v1111
        %v1113 = vpop.xlane.xlu0 %1112
        %v1114 = vadd.f32 %v1011, %v1013
        %1115 = vadd.xlane.f32.xlu0 %v1114
        %v1116 = vpop.xlane.xlu0 %1115
        %v1117 = vadd.f32 %v1015, %v1017
        %1118 = vadd.xlane.f32.xlu0 %v1117
        %v1119 = vpop.xlane.xlu0 %1118
        %v1120 = vadd.f32 %v1019, %v1021
        %1121 = vadd.xlane.f32.xlu0 %v1120
        %v1122 = vpop.xlane.xlu0 %1121
        %v1123 = vadd.f32 %v1023, %v1025
        %1124 = vadd.xlane.f32.xlu0 %v1123
        %v1125 = vpop.xlane.xlu0 %1124
        %v1126 = vadd.f32 %v1027, %v1029
        %1127 = vadd.xlane.f32.xlu0 %v1126
        %v1128 = vpop.xlane.xlu0 %1127
        %v1129 = vadd.f32 %v1031, %v1033
        %1130 = vadd.xlane.f32.xlu0 %v1129
        %v1131 = vpop.xlane.xlu0 %1130
        %v1132 = vadd.f32 %v1035, %v1037
        %1133 = vadd.xlane.f32.xlu0 %v1132
        %v1134 = vpop.xlane.xlu0 %1133
        %v1135 = vadd.f32 %v1039, %v1041
        %1136 = vadd.xlane.f32.xlu0 %v1135
        %v1137 = vpop.xlane.xlu0 %1136
        %v1138 = vrcp.pop %v1044
        %v1139 = vrcp.pop %v1047
        %v1140 = vrcp.pop %v1050
        %v1141 = vrcp.pop %v1053
        %v1142 = vrcp.pop %v1056
        %v1143 = vrcp.pop %v1059
        %v1144 = vrcp.pop %v1062
        %v1145 = vrcp.pop %v1065
        %v1146 = vrcp.pop %v1068
        %v1147 = vrcp.pop %v1071
        %v1148 = vrcp.pop %v1074
        %v1149 = vrcp.pop %v1077
        %v1150 = vrcp.pop %v1080
        %v1151 = vrcp.pop %v1083
        %v1152 = vrcp.pop %v1086
        %v1153 = vrcp.pop %v1089
        %v1154 = vrcp.pop %v1092
        %v1155 = vrcp.pop %v1095
        %v1156 = vrcp.pop %v1098
        %v1157 = vrcp.pop %v1101
        %v1158 = vrcp.pop %v1104
        %v1159 = vrcp.pop %v1107
        %v1160 = vrcp.pop %v1110
        %v1161 = vrcp.pop %v1113
        %v1162 = vrcp.pop %v1116
        %v1163 = vrcp.pop %v1119
        %v1164 = vrcp.pop %v1122
        %v1165 = vrcp.pop %v1125
        %v1166 = vrcp.pop %v1128
        %v1167 = vrcp.pop %v1131
        %v1168 = vrcp.pop %v1134
        %v1169 = vrcp.pop %v1137
        %v1170 = vmul.f32 %v915, %v1138
        %v1171 = vmul.f32 %v917, %v1138
        %v1172 = vmul.f32 %v919, %v1139
        %v1173 = vmul.f32 %v921, %v1139
        %v1174 = vmul.f32 %v923, %v1140
        %v1175 = vmul.f32 %v925, %v1140
        %v1176 = vmul.f32 %v927, %v1141
        %v1177 = vmul.f32 %v929, %v1141
        %v1178 = vmul.f32 %v931, %v1142
        %v1179 = vmul.f32 %v933, %v1142
        %v1180 = vmul.f32 %v935, %v1143
        %v1181 = vmul.f32 %v937, %v1143
        %v1182 = vmul.f32 %v939, %v1144
        %v1183 = vmul.f32 %v941, %v1144
        %v1184 = vmul.f32 %v943, %v1145
        %v1185 = vmul.f32 %v945, %v1145
        %v1186 = vmul.f32 %v947, %v1146
        %v1187 = vmul.f32 %v949, %v1146
        %v1188 = vmul.f32 %v951, %v1147
        %v1189 = vmul.f32 %v953, %v1147
        %v1190 = vmul.f32 %v955, %v1148
        %v1191 = vmul.f32 %v957, %v1148
        %v1192 = vmul.f32 %v959, %v1149
        %v1193 = vmul.f32 %v961, %v1149
        %v1194 = vmul.f32 %v963, %v1150
        %v1195 = vmul.f32 %v965, %v1150
        %v1196 = vmul.f32 %v967, %v1151
        %v1197 = vmul.f32 %v969, %v1151
        %v1198 = vmul.f32 %v971, %v1152
        %v1199 = vmul.f32 %v973, %v1152
        %v1200 = vmul.f32 %v975, %v1153
        %v1201 = vmul.f32 %v977, %v1153
        %v1202 = vmul.f32 %v979, %v1154
        %v1203 = vmul.f32 %v981, %v1154
        %v1204 = vmul.f32 %v983, %v1155
        %v1205 = vmul.f32 %v985, %v1155
        %v1206 = vmul.f32 %v987, %v1156
        %v1207 = vmul.f32 %v989, %v1156
        %v1208 = vmul.f32 %v991, %v1157
        %v1209 = vmul.f32 %v993, %v1157
        %v1210 = vmul.f32 %v995, %v1158
        %v1211 = vmul.f32 %v997, %v1158
        %v1212 = vmul.f32 %v999, %v1159
        %v1213 = vmul.f32 %v1001, %v1159
        %v1214 = vmul.f32 %v1003, %v1160
        %v1215 = vmul.f32 %v1005, %v1160
        %v1216 = vmul.f32 %v1007, %v1161
        %v1217 = vmul.f32 %v1009, %v1161
        %v1218 = vmul.f32 %v1011, %v1162
        %v1219 = vmul.f32 %v1013, %v1162
        %v1220 = vmul.f32 %v1015, %v1163
        %v1221 = vmul.f32 %v1017, %v1163
        %v1222 = vmul.f32 %v1019, %v1164
        %v1223 = vmul.f32 %v1021, %v1164
        %v1224 = vmul.f32 %v1023, %v1165
        %v1225 = vmul.f32 %v1025, %v1165
        %v1226 = vmul.f32 %v1027, %v1166
        %v1227 = vmul.f32 %v1029, %v1166
        %v1228 = vmul.f32 %v1031, %v1167
        %v1229 = vmul.f32 %v1033, %v1167
        %v1230 = vmul.f32 %v1035, %v1168
        %v1231 = vmul.f32 %v1037, %v1168
        %v1232 = vmul.f32 %v1039, %v1169
        %v1233 = vmul.f32 %v1041, %v1169
        %v1234 = vpack.c.bf16 %v1172, %v1170
        %v1235 = vpack.c.bf16 %v1173, %v1171
        %v1236 = vpack.c.bf16 %v1176, %v1174
        %v1237 = vpack.c.bf16 %v1177, %v1175
        %v1238 = vpack.c.bf16 %v1180, %v1178
        %v1239 = vpack.c.bf16 %v1181, %v1179
        %v1240 = vpack.c.bf16 %v1184, %v1182
        %v1241 = vpack.c.bf16 %v1185, %v1183
        %v1242 = vpack.c.bf16 %v1188, %v1186
        %v1243 = vpack.c.bf16 %v1189, %v1187
        %v1244 = vpack.c.bf16 %v1192, %v1190
        %v1245 = vpack.c.bf16 %v1193, %v1191
        %v1246 = vpack.c.bf16 %v1196, %v1194
        %v1247 = vpack.c.bf16 %v1197, %v1195
        %v1248 = vpack.c.bf16 %v1200, %v1198
        %v1249 = vpack.c.bf16 %v1201, %v1199
        %v1250 = vpack.c.bf16 %v1204, %v1202
        %v1251 = vpack.c.bf16 %v1205, %v1203
        %v1252 = vpack.c.bf16 %v1208, %v1206
        %v1253 = vpack.c.bf16 %v1209, %v1207
        %v1254 = vpack.c.bf16 %v1212, %v1210
        %v1255 = vpack.c.bf16 %v1213, %v1211
        %v1256 = vpack.c.bf16 %v1216, %v1214
        %v1257 = vpack.c.bf16 %v1217, %v1215
        %v1258 = vpack.c.bf16 %v1220, %v1218
        %v1259 = vpack.c.bf16 %v1221, %v1219
        %v1260 = vpack.c.bf16 %v1224, %v1222
        %v1261 = vpack.c.bf16 %v1225, %v1223
        %v1262 = vpack.c.bf16 %v1228, %v1226
        %v1263 = vpack.c.bf16 %v1229, %v1227
        %v1264 = vpack.c.bf16 %v1232, %v1230
        %v1265 = vpack.c.bf16 %v1233, %v1231
        %v1268 = vunpack.c.l.s4 1983009808
        %v1269 = vunpack.c.0.s8 %v1268
        %v1270 = vlaneseq
        %v1271 = vshrl.u32 %v1270, 7
        %v1272 = vsub.s32 %v1269, %v1271
        %v1273 = vrot.slane %v463, %v1272
        %v1274 = vcombine.high %v1273, %v1273
        %1277 = vmatprep.subr.bf16.mxu0 %v1235
        %1278 = vmatpush1.bf16.xpose.msra.mxu0 %v1234
        %1279 = vmatprep.subr.bf16.mxu0 %v1237
        %1280 = vmatpush1.bf16.xpose.msra.mxu0 %v1236
        %1281 = vmatprep.subr.bf16.mxu0 %v1239
        %1282 = vmatpush1.bf16.xpose.msra.mxu0 %v1238
        %1283 = vmatprep.subr.bf16.mxu0 %v1241
        %1284 = vmatpush1.bf16.xpose.msra.mxu0 %v1240
        %1285 = vmatprep.subr.bf16.mxu0 %v1243
        %1286 = vmatpush1.bf16.xpose.msra.mxu0 %v1242
        %1287 = vmatprep.subr.bf16.mxu0 %v1245
        %1288 = vmatpush1.bf16.xpose.msra.mxu0 %v1244
        %1289 = vmatprep.subr.bf16.mxu0 %v1247
        %1290 = vmatpush1.bf16.xpose.msra.mxu0 %v1246
        %1291 = vmatprep.subr.bf16.mxu0 %v1249
        %1292 = vmatpush1.bf16.xpose.msra.mxu0 %v1248
        %1293 = vmatprep.subr.bf16.mxu0 %v1251
        %1294 = vmatpush1.bf16.xpose.msra.mxu0 %v1250
        %1295 = vmatprep.subr.bf16.mxu0 %v1253
        %1296 = vmatpush1.bf16.xpose.msra.mxu0 %v1252
        %1297 = vmatprep.subr.bf16.mxu0 %v1255
        %1298 = vmatpush1.bf16.xpose.msra.mxu0 %v1254
        %1299 = vmatprep.subr.bf16.mxu0 %v1257
        %1300 = vmatpush1.bf16.xpose.msra.mxu0 %v1256
        %1301 = vmatprep.subr.bf16.mxu0 %v1259
        %1302 = vmatpush1.bf16.xpose.msra.mxu0 %v1258
        %1303 = vmatprep.subr.bf16.mxu0 %v1261
        %1304 = vmatpush1.bf16.xpose.msra.mxu0 %v1260
        %1305 = vmatprep.subr.bf16.mxu0 %v1263
        %1306 = vmatpush1.bf16.xpose.msra.mxu0 %v1262
        %1307 = vmatprep.subr.bf16.mxu0 %v1265
        %1308 = vmatpush1.bf16.xpose.msra.mxu0 %v1264
        %1309 = vmatprep.mubr.bf16.mxu0 %v1274
        %1310 = vmatmul.mubr.bf16.gmra.mrb[0].mxu0 %v1273
        %v1311 = vpop.f32.mrb[0].mxu0
        %v1312 = vadd.f32 0.0, %v1311
        %v1313 = vpop.f32.mrb[0].mxu0
        %v1314 = vadd.f32 0.0, %v1313
        %v1315 = vpop.f32.mrb[0].mxu0
        %v1316 = vpop.f32.mrb[0].mxu0
        %1317 = vdwg.mxu0
        %v1318 = vld [vmem:[%s3] sm:$0xf]
        %v1319 = vld [vmem:[%s3 + $0x4] sm:$0xf]
        %v1320 = vld [vmem:[%s3 + $0x8] sm:$0xf]
        %v1321 = vld [vmem:[%s3 + $0xc] sm:$0xf]
        %v1322 = vpack.c.bf16 %v1312, %v1312
        %v1323 = vpack.c.bf16 %v1314, %v1314
        %v1324 = vld [vmem:[%s5] sm:$0xff]
        %v1325 = vld [vmem:[%s5 + $0x8] sm:$0xff]
        %v1326 = vld [vmem:[%s5 + $0x10] sm:$0xff]
        %v1327 = vld [vmem:[%s5 + $0x18] sm:$0xff]
        %1329 = vset.pattern.permute.xlu0 0
        %1330 = vperm.xlu0 %1329, %v1324
        %v1331 = vpop.permute.xlu0 %1330
        %1334 = vset.pattern.permute.xlu0 0
        %1335 = vperm.xlu0 %1334, %v1325
        %v1336 = vpop.permute.xlu0 %1335
        %1339 = vset.pattern.permute.xlu0 0
        %1340 = vperm.xlu0 %1339, %v1326
        %v1341 = vpop.permute.xlu0 %1340
        %1344 = vset.pattern.permute.xlu0 0
        %1345 = vperm.xlu0 %1344, %v1327
        %v1346 = vpop.permute.xlu0 %1345
        %v1352 = vunpack.c.l.b16 %v1318
        %v1353 = vunpack.c.l.b16 %v1319
        %v1354 = vunpack.c.l.b16 %v1320
        %v1355 = vunpack.c.l.b16 %v1321
        %v1356 = vpack.c.b16 %v1353, %v1352
        %v1357 = vpack.c.b16 %v1355, %v1354
        %v1359 = vsel %vm505, %v1356, 0
        %v1362 = vsel %vm505, %v1357, 0
        %v1365 = vsel %vm554, %v1322, 0
        %v1368 = vsel %vm554, %v1323, 0
        %1370 = vmatprep.subr.bf16.mxu0 %v1368
        %1371 = vmatpush1.bf16.msra.mxu0 %v1365
        %1372 = vmatprep.subr.bf16.mxu0 0
        %1373 = vmatpush1.bf16.msra.mxu0 0
        %1374 = vmatprep.subr.bf16.mxu0 0
        %1375 = vmatpush1.bf16.msra.mxu0 0
        %1376 = vmatprep.subr.bf16.mxu0 0
        %1377 = vmatpush1.bf16.msra.mxu0 0
        %1378 = vmatprep.subr.bf16.mxu0 0
        %1379 = vmatpush1.bf16.msra.mxu0 0
        %1380 = vmatprep.subr.bf16.mxu0 0
        %1381 = vmatpush1.bf16.msra.mxu0 0
        %1382 = vmatprep.subr.bf16.mxu0 0
        %1383 = vmatpush1.bf16.msra.mxu0 0
        %1384 = vmatprep.subr.bf16.mxu0 0
        %1385 = vmatpush1.bf16.msra.mxu0 0
        %1386 = vmatprep.subr.bf16.mxu0 0
        %1387 = vmatpush1.bf16.msra.mxu0 0
        %1388 = vmatprep.subr.bf16.mxu0 0
        %1389 = vmatpush1.bf16.msra.mxu0 0
        %1390 = vmatprep.subr.bf16.mxu0 0
        %1391 = vmatpush1.bf16.msra.mxu0 0
        %1392 = vmatprep.subr.bf16.mxu0 0
        %1393 = vmatpush1.bf16.msra.mxu0 0
        %1394 = vmatprep.subr.bf16.mxu0 0
        %1395 = vmatpush1.bf16.msra.mxu0 0
        %1396 = vmatprep.subr.bf16.mxu0 0
        %1397 = vmatpush1.bf16.msra.mxu0 0
        %1398 = vmatprep.subr.bf16.mxu0 0
        %1399 = vmatpush1.bf16.msra.mxu0 0
        %1400 = vmatprep.subr.bf16.mxu0 0
        %1401 = vmatpush1.bf16.msra.mxu0 0
        %1402 = vmatprep.mubr.bf16.mxu0 0
        %1403 = vmatmul.mubr.bf16.gmra.mrb[0].mxu0 %v1359
        %v1404 = vpop.f32.mrb[0].mxu0
        %v1405 = vadd.f32 %v1331, %v1404
        %v1406 = vpop.f32.mrb[0].mxu0
        %v1407 = vadd.f32 %v1331, %v1406
        %v1408 = vpop.f32.mrb[0].mxu0
        %v1409 = vadd.f32 %v1336, %v1408
        %v1410 = vpop.f32.mrb[0].mxu0
        %v1411 = vadd.f32 %v1336, %v1410
        %1412 = vmatprep.mubr.bf16.mxu0 0
        %1413 = vmatmul.mubr.bf16.gmra.mrb[0].mxu0 %v1362
        %v1414 = vpop.f32.mrb[0].mxu0
        %v1415 = vadd.f32 %v1341, %v1414
        %v1416 = vpop.f32.mrb[0].mxu0
        %v1417 = vadd.f32 %v1341, %v1416
        %v1418 = vpop.f32.mrb[0].mxu0
        %v1419 = vadd.f32 %v1346, %v1418
        %v1420 = vpop.f32.mrb[0].mxu0
        %v1421 = vadd.f32 %v1346, %v1420
        %1422 = vdwg.mxu0
        %1423 = vst [vmem:[%s283] sm:$0xff] %v1405
        %1424 = vst [vmem:[%s283 + $0x8] sm:$0xff] %v1407
        %1425 = vst [vmem:[%s283 + $0x10] sm:$0xff] %v1409
        %1426 = vst [vmem:[%s283 + $0x18] sm:$0xff] %v1411
        %1427 = vst [vmem:[%s283 + $0x20] sm:$0xff] %v1415
        %1428 = vst [vmem:[%s283 + $0x28] sm:$0xff] %v1417
        %1429 = vst [vmem:[%s283 + $0x30] sm:$0xff] %v1419
        %1430 = vst [vmem:[%s283 + $0x38] sm:$0xff] %v1421
        %s1431 = sand.u32 %s176, 1
        %s1432 = scalar_lea.sflag [#allocation5], %s1431
        %s1433 = sand.u32 %s176, 1
        %s1434 = smul.addr %s1433, 64
        %s1435 = scalar_lea.vmem [#allocation6], %s1434
        // Predicated region
        $region53: #{tpu_custom_call.1} parent=43 // pred_check
          %p1436 = pneg %p186
        $region54: #{tpu_custom_call.1} parent=43 // pred_check_branch
          %1438 = sbr.rel (%p1436) target = $region56
        $region55: #{tpu_custom_call.1} parent=43 // pred_region
          %s1439 = smul.u32 2, %s28
          %s1441 = ssub.s32 1024, 1024
          %1442 = vsyncadd %s1432, %s1441
          %s1443 = smul.addr %s27, 8
          %s1444 = sadd.s32 %s1439, %s1443
          %s1445 = smul.addr %s1444, 128
          %s1446 = scalar_lea.hbm %s6, %s1445
          %s1447 = sshll.u32 %s1435, 4
          %s1448 = int_to_ptr.vmem [resolvable:$true] %s1447
          %1453 = dma.vmem_to_hbm [thread:$0]  %s1448, 1024, %s1446, %s1432, 256, 256, 16
        $region56: #{tpu_custom_call.1} parent=43 // pred_fallthru
          _
      $region44: #{tpu_custom_call.1} parent=5 // pred_fallthru
        _
      %p1454 = scmp.le.s32.totalorder 2, %s18
      // Predicated region
      $region57: #{tpu_custom_call.1} parent=5 // pred_check
        %p1455 = pneg %p1454
      $region58: #{tpu_custom_call.1} parent=5 // pred_check_branch
        %1457 = sbr.rel (%p1455) target = $region60
      $region59: #{tpu_custom_call.1} parent=5 // pred_region
        %s1458 = ssub.s32 %s18, 2
        // Predicated region
        $region61: #{tpu_custom_call.1} parent=59 // pred_check
          %p1459 = pneg %p192
        $region62: #{tpu_custom_call.1} parent=59 // pred_check_branch
          %1461 = sbr.rel (%p1459) target = $region64
        $region63: #{tpu_custom_call.1} parent=59 // pred_region
          %s1462 = sand.u32 %s177, 1
          %s1463 = scalar_lea.sflag [#allocation5], %s1462
          %s1464 = sand.u32 %s177, 1
          %s1465 = smul.addr %s1464, 64
          %s1466 = scalar_lea.vmem [#allocation6], %s1465
          %1467 = dma.done %s1463, 1024
        $region64: #{tpu_custom_call.1} parent=59 // pred_fallthru
          _
      $region60: #{tpu_custom_call.1} parent=5 // pred_fallthru
        _
    $region6: #{tpu_custom_call.1} parent=1 // loop_footer
      %s22 = sadd.s32 1, %s18
    $region7: #{tpu_custom_call.1} parent=1 // loop_footer_branch
      %17 = sbr.rel target = $region3
    $region8: #{tpu_custom_call.1} parent=1 // loop_exit
      _
    %1468 = vsyncpa [#allocation4], 1
    %s1469 = scalar_lea.sflag [#allocation4], 1
    %1470 = vsyncpa %s1469, 1
    %1471 = vsyncpa [#allocation5], 1
    %s1472 = scalar_lea.sflag [#allocation5], 1
    %1473 = vsyncpa %s1472, 1

</llo_original>
